<compile_context>
chip_gen: v5e
topology: v5e:2x2
jax: 0.10.0
libtpu: 0.0.40
codegen_flags: <defaults>
</compile_context>

<pallas_src>
import functools

import jax
import jax.numpy as jnp
from jax.experimental import pallas as pl
from jax.experimental.pallas import tpu as pltpu


def _rnn_chunk_kernel(hidden_size, time_block,
                      x_ref, h0_ref, w12a_ref, w12b_ref, b12_ref, w3_ref, b3_ref,
                      out_ref, hid_ref, h_scratch):
    """One (batch_block, time_chunk) grid point of the fused RNN.

    x_ref    : (TT, BB, CI)  per-chunk [category|input] slab for this batch block
    h0_ref   : (BB, H)       initial hidden for this batch block
    w12a_ref : (CI, H+O)     merged i2h|i2o weight, input rows
    w12b_ref : (H,  H+O)     merged i2h|i2o weight, hidden rows
    b12_ref  : (1,  H+O)     merged bias
    w3_ref   : (H+O, O)      o2o weight (pre-transposed)
    b3_ref   : (1,  O)
    out_ref  : (TT, BB, O)   per-step log-softmax outputs
    hid_ref  : (TT, BB, H)   per-step hidden outputs
    h_scratch: (BB, H)       VMEM-resident hidden carry (f32)
    """
    tc = pl.program_id(1)

    # Start of a batch block's sequence: load the initial hidden state.
    @pl.when(tc == 0)
    def _():
        h_scratch[...] = h0_ref[...]

    # Weights stay in vregs / VMEM for the whole chunk.
    w12a = w12a_ref[...]
    w12b = w12b_ref[...]
    b12 = b12_ref[...]
    w3 = w3_ref[...]
    b3 = b3_ref[...]

    h = h_scratch[...]
    # Fully unrolled (time_block is a small static int) recurrence over the chunk.
    for t in range(time_block):
        x_t = x_ref[t]                                             # (BB, CI)
        # ho = [i2h(x) | i2o(x)] for x = cat(category, input, hidden); the concat
        # is realized as a split matmul over the merged weight.
        ho = (jnp.dot(x_t, w12a, preferred_element_type=jnp.float32)
              + jnp.dot(h, w12b, preferred_element_type=jnp.float32)
              + b12)                                               # (BB, H+O)
        h_new = ho[:, :hidden_size]                                # i2h result

        # o2o(cat(hidden, output)) -- ho is already the contiguous (BB, H+O) slab.
        oo = jnp.dot(ho, w3, preferred_element_type=jnp.float32) + b3

        # dropout(p=0.1) eval mode -> identity.
        # log_softmax(dim=1), max-shifted, in f32.
        m = jnp.max(oo, axis=-1, keepdims=True)
        z = oo - m
        lse = jnp.log(jnp.sum(jnp.exp(z), axis=-1, keepdims=True))

        out_ref[t] = (z - lse).astype(out_ref.dtype)
        hid_ref[t] = h_new.astype(hid_ref.dtype)
        h = h_new

    h_scratch[...] = h


@functools.partial(jax.jit, static_argnames=("batch_block", "time_block"))
def rnn_sequence_forward(category_seq, input_seq, hidden0, params, *,
                         batch_block=8, time_block=8):
    """Applies the PyTorch RNN.forward over a whole sequence in one pallas_call.

    category_seq: (T, B, n_categories)   (n_categories may be 0)
    input_seq:    (T, B, input_size)
    hidden0:      (B, hidden_size)
    Returns (log_probs (T, B, output_size), hiddens (T, B, hidden_size));
    hiddens[-1] is the final recurrent state.
    """
    w_i2h, b_i2h, w_i2o, b_i2o, w_o2o, b_o2o = params
    H = w_i2h.shape[0]          # hidden_size (PyTorch weight is (out, in))
    O = w_i2o.shape[0]          # output_size
    T, B = input_seq.shape[0], input_seq.shape[1]
    CI = category_seq.shape[-1] + input_seq.shape[-1]

    BB = min(batch_block, B)
    assert B % BB == 0, "batch must be a multiple of the batch block"
    # Largest divisor of T that is <= time_block (static) -> timesteps per chunk.
    TT = max(d for d in range(1, min(time_block, T) + 1) if T % d == 0)

    # ---- one-time (per sequence) glue: merged / transposed weights --------
    x_in = jnp.concatenate([category_seq, input_seq], axis=-1)     # (T, B, CI)
    w12 = jnp.concatenate([w_i2h, w_i2o], axis=0).T                # (C, H+O)
    w12a = w12[:CI, :]                                             # input rows
    w12b = w12[CI:, :]                                             # hidden rows
    b12 = jnp.concatenate([b_i2h, b_i2o]).reshape(1, H + O)
    w3 = w_o2o.T                                                   # (H+O, O)
    b3 = b_o2o.reshape(1, O)

    kernel = functools.partial(_rnn_chunk_kernel, H, TT)
    const = lambda b, t: (0, 0)          # weights: DMA once, stay resident

    out, hid = pl.pallas_call(
        kernel,
        out_shape=(jax.ShapeDtypeStruct((T, B, O), jnp.float32),
                   jax.ShapeDtypeStruct((T, B, H), jnp.float32)),
        grid_spec=pltpu.PrefetchScalarGridSpec(
            num_scalar_prefetch=0,
            grid=(B // BB, T // TT),     # (batch blocks, time chunks)
            in_specs=[
                pl.BlockSpec((TT, BB, CI), lambda b, t: (t, b, 0)),    # x_in
                pl.BlockSpec((BB, H), lambda b, t: (b, 0)),            # hidden0
                pl.BlockSpec(w12a.shape, const),                       # w12a
                pl.BlockSpec(w12b.shape, const),                       # w12b
                pl.BlockSpec(b12.shape, const),                        # b12
                pl.BlockSpec(w3.shape, const),                         # w3
                pl.BlockSpec(b3.shape, const),                         # b3
            ],
            out_specs=(
                pl.BlockSpec((TT, BB, O), lambda b, t: (t, b, 0)),     # out
                pl.BlockSpec((TT, BB, H), lambda b, t: (t, b, 0)),     # hidden
            ),
            scratch_shapes=[pltpu.VMEM((BB, H), jnp.float32)],
        ),
        compiler_params=pltpu.CompilerParams(
            dimension_semantics=("parallel", "arbitrary")),
    )(x_in, hidden0, w12a, w12b, b12, w3, b3)
    return out, hid


def init_params(key, n_categories, input_size, hidden_size, output_size):
    """Deterministic init mirroring nn.Linear default (uniform +/- 1/sqrt(fan_in))."""
    c = n_categories + input_size + hidden_size
    ho = hidden_size + output_size
    ks = jax.random.split(key, 6)

    def lin(kw, kb, fan_in, fan_out):
        bound = 1.0 / jnp.sqrt(fan_in)
        w = jax.random.uniform(kw, (fan_out, fan_in), jnp.float32, -bound, bound)
        b = jax.random.uniform(kb, (fan_out,), jnp.float32, -bound, bound)
        return w, b

    w_i2h, b_i2h = lin(ks[0], ks[1], c, hidden_size)
    w_i2o, b_i2o = lin(ks[2], ks[3], c, output_size)
    w_o2o, b_o2o = lin(ks[4], ks[5], ho, output_size)
    return (w_i2h, b_i2h, w_i2o, b_i2o, w_o2o, b_o2o)


def _reference_step(category, inp, hidden, params):
    """Pure-JAX single-step reference matching the PyTorch forward (eval dropout)."""
    w_i2h, b_i2h, w_i2o, b_i2o, w_o2o, b_o2o = params
    x = jnp.concatenate([category, inp, hidden], axis=1)
    h = x @ w_i2h.T + b_i2h
    o = x @ w_i2o.T + b_i2o
    out = jnp.concatenate([h, o], axis=1) @ w_o2o.T + b_o2o
    return jax.nn.log_softmax(out, axis=1), h


def _reference_sequence(category_seq, input_seq, hidden0, params):
    outs, hids = [], []
    h = hidden0
    for t in range(input_seq.shape[0]):
        o, h = _reference_step(category_seq[t], input_seq[t], h, params)
        outs.append(o)
        hids.append(h)
    return jnp.stack(outs), jnp.stack(hids)


if __name__ == "__main__":
    # Small shapes consistent with the module:
    #   n_categories = len(all_categories) = 0, input_size=16, hidden_size=32,
    #   output_size=16; batch=16 (two sublane-filled blocks of 8), seq_len=8.
    n_categories, input_size, hidden_size, output_size = 0, 16, 32, 16
    batch, seq_len = 16, 8

    key = jax.random.PRNGKey(0)
    k_par, k_cat, k_in, k_hid = jax.random.split(key, 4)

    params = init_params(k_par, n_categories, input_size, hidden_size, output_size)
    category_seq = jax.random.normal(k_cat, (seq_len, batch, n_categories), jnp.float32)
    input_seq = jax.random.normal(k_in, (seq_len, batch, input_size), jnp.float32)
    hidden0 = jax.random.normal(k_hid, (batch, hidden_size), jnp.float32)

    out, hid = rnn_sequence_forward(category_seq, input_seq, hidden0, params,
                                    batch_block=8, time_block=8)
    jax.block_until_ready((out, hid))

    ref_out, ref_hid = _reference_sequence(category_seq, input_seq, hidden0, params)
    assert jnp.allclose(out, ref_out, atol=1e-4, rtol=1e-4), \
        float(jnp.max(jnp.abs(out - ref_out)))
    assert jnp.allclose(hid, ref_hid, atol=1e-4, rtol=1e-4), \
        float(jnp.max(jnp.abs(hid - ref_hid)))

    print("KERNEL_OK")
</pallas_src>

<mosaic_0001>
module attributes {stable_mosaic.version = 11 : i64} {
  func.func @_rnn_chunk_kernel(%arg0: i32, %arg1: i32, %arg2: memref<8x8x16xf32, #tpu.memory_space<vmem>>, %arg3: memref<8x32xf32, #tpu.memory_space<vmem>>, %arg4: memref<16x48xf32, #tpu.memory_space<vmem>>, %arg5: memref<32x48xf32, #tpu.memory_space<vmem>>, %arg6: memref<1x48xf32, #tpu.memory_space<vmem>>, %arg7: memref<48x16xf32, #tpu.memory_space<vmem>>, %arg8: memref<1x16xf32, #tpu.memory_space<vmem>>, %arg9: memref<8x8x16xf32, #tpu.memory_space<vmem>>, %arg10: memref<8x8x32xf32, #tpu.memory_space<vmem>>, %arg11: memref<8x32xf32, #tpu.memory_space<vmem>>) attributes {dimension_semantics = [#tpu.dimension_semantics<parallel>, #tpu.dimension_semantics<arbitrary>], iteration_bounds = array<i64: 2, 1>, scalar_prefetch = 0 : i64, scratch_operands = 1 : i64, tpu.core_type = #tpu.core_type<tc>, window_params = [{transform_indices = @transform_0, window_bounds = array<i64: 8, 8, 16>}, {transform_indices = @transform_1, window_bounds = array<i64: 8, 32>}, {pipeline_mode = #tpu.pipeline_mode<synchronous>, transform_indices = @transform_2, window_bounds = array<i64: 16, 48>}, {pipeline_mode = #tpu.pipeline_mode<synchronous>, transform_indices = @transform_3, window_bounds = array<i64: 32, 48>}, {pipeline_mode = #tpu.pipeline_mode<synchronous>, transform_indices = @transform_4, window_bounds = array<i64: 1, 48>}, {pipeline_mode = #tpu.pipeline_mode<synchronous>, transform_indices = @transform_5, window_bounds = array<i64: 48, 16>}, {pipeline_mode = #tpu.pipeline_mode<synchronous>, transform_indices = @transform_6, window_bounds = array<i64: 1, 16>}, {transform_indices = @transform_7, window_bounds = array<i64: 8, 8, 16>}, {transform_indices = @transform_8, window_bounds = array<i64: 8, 8, 32>}]} {
    %c0_i32 = arith.constant 0 : i32
    %0 = arith.cmpi eq, %arg1, %c0_i32 : i32
    %1 = arith.extui %0 : i1 to i32
    %c0_i32_0 = arith.constant 0 : i32
    %2 = arith.cmpi ne, %1, %c0_i32_0 : i32
    scf.if %2 {
      %c0_118 = arith.constant 0 : index
      %c0_119 = arith.constant 0 : index
      %226 = vector.load %arg3[%c0_118, %c0_119] : memref<8x32xf32, #tpu.memory_space<vmem>>, vector<8x32xf32>
      %c0_120 = arith.constant 0 : index
      %c0_121 = arith.constant 0 : index
      %227 = vector.load %arg11[%c0_120, %c0_121] : memref<8x32xf32, #tpu.memory_space<vmem>>, vector<8x32xf32>
      tpu.vector_store %arg11[%c0_120, %c0_121], %226 {strides = array<i32>} : memref<8x32xf32, #tpu.memory_space<vmem>>, vector<8x32xf32>,
    } else {
    }
    %c0 = arith.constant 0 : index
    %c0_1 = arith.constant 0 : index
    %3 = vector.load %arg4[%c0, %c0_1] : memref<16x48xf32, #tpu.memory_space<vmem>>, vector<16x48xf32>
    %c0_2 = arith.constant 0 : index
    %c0_3 = arith.constant 0 : index
    %4 = vector.load %arg5[%c0_2, %c0_3] : memref<32x48xf32, #tpu.memory_space<vmem>>, vector<32x48xf32>
    %c0_4 = arith.constant 0 : index
    %c0_5 = arith.constant 0 : index
    %5 = vector.load %arg6[%c0_4, %c0_5] : memref<1x48xf32, #tpu.memory_space<vmem>>, vector<1x48xf32>
    %c0_6 = arith.constant 0 : index
    %c0_7 = arith.constant 0 : index
    %6 = vector.load %arg7[%c0_6, %c0_7] : memref<48x16xf32, #tpu.memory_space<vmem>>, vector<48x16xf32>
    %c0_8 = arith.constant 0 : index
    %c0_9 = arith.constant 0 : index
    %7 = vector.load %arg8[%c0_8, %c0_9] : memref<1x16xf32, #tpu.memory_space<vmem>>, vector<1x16xf32>
    %c0_10 = arith.constant 0 : index
    %c0_11 = arith.constant 0 : index
    %8 = vector.load %arg11[%c0_10, %c0_11] : memref<8x32xf32, #tpu.memory_space<vmem>>, vector<8x32xf32>
    %c0_12 = arith.constant 0 : index
    %c0_13 = arith.constant 0 : index
    %c0_14 = arith.constant 0 : index
    %9 = vector.load %arg2[%c0_12, %c0_13, %c0_14] : memref<8x8x16xf32, #tpu.memory_space<vmem>>, vector<1x8x16xf32>
    %10 = vector.shape_cast %9 : vector<1x8x16xf32> to vector<8x16xf32>
    %cst = arith.constant dense<0.000000e+00> : vector<8x48xf32>
    %11 = tpu.matmul %10, %3, %cst {dimension_numbers = #tpu.dot_dimension_numbers<[1], [0], [0], [1], [0, 0, 1, 1], [], []>} : vector<8x16xf32>, vector<16x48xf32>, vector<8x48xf32> -> vector<8x48xf32>
    %cst_15 = arith.constant dense<0.000000e+00> : vector<8x48xf32>
    %12 = tpu.matmul %8, %4, %cst_15 {dimension_numbers = #tpu.dot_dimension_numbers<[1], [0], [0], [1], [0, 0, 1, 1], [], []>} : vector<8x32xf32>, vector<32x48xf32>, vector<8x48xf32> -> vector<8x48xf32>
    %13 = arith.addf %11, %12 : vector<8x48xf32>
    %14 = vector.broadcast %5 : vector<1x48xf32> to vector<8x48xf32>
    %15 = arith.addf %13, %14 : vector<8x48xf32>
    %16 = vector.extract_strided_slice %15 {offsets = [0, 0], sizes = [8, 32], strides = [1, 1]} : vector<8x48xf32> to vector<8x32xf32>
    %cst_16 = arith.constant dense<0.000000e+00> : vector<8x16xf32>
    %17 = tpu.matmul %15, %6, %cst_16 {dimension_numbers = #tpu.dot_dimension_numbers<[1], [0], [0], [1], [0, 0, 1, 1], [], []>} : vector<8x48xf32>, vector<48x16xf32>, vector<8x16xf32> -> vector<8x16xf32>
    %18 = vector.broadcast %7 : vector<1x16xf32> to vector<8x16xf32>
    %19 = arith.addf %17, %18 : vector<8x16xf32>
    %cst_17 = arith.constant dense<0xFF800000> : vector<8xf32>
    %20 = vector.multi_reduction <maximumf>, %19, %cst_17 [1] : vector<8x16xf32> to vector<8xf32>
    %21 = vector.shape_cast %20 : vector<8xf32> to vector<8x1xf32>
    %22 = vector.broadcast %21 : vector<8x1xf32> to vector<8x16xf32>
    %23 = arith.subf %19, %22 : vector<8x16xf32>
    %24 = math.exp %23 : vector<8x16xf32>
    %cst_18 = arith.constant dense<0.000000e+00> : vector<8xf32>
    %25 = vector.multi_reduction <add>, %24, %cst_18 [1] : vector<8x16xf32> to vector<8xf32>
    %26 = vector.shape_cast %25 : vector<8xf32> to vector<8x1xf32>
    %27 = math.log %26 : vector<8x1xf32>
    %28 = vector.broadcast %27 : vector<8x1xf32> to vector<8x16xf32>
    %29 = arith.subf %23, %28 : vector<8x16xf32>
    %c0_19 = arith.constant 0 : index
    %c0_20 = arith.constant 0 : index
    %c0_21 = arith.constant 0 : index
    %30 = vector.load %arg9[%c0_19, %c0_20, %c0_21] : memref<8x8x16xf32, #tpu.memory_space<vmem>>, vector<1x8x16xf32>
    %31 = vector.shape_cast %30 : vector<1x8x16xf32> to vector<8x16xf32>
    %32 = vector.shape_cast %29 : vector<8x16xf32> to vector<1x8x16xf32>
    tpu.vector_store %arg9[%c0_19, %c0_20, %c0_21], %32 {strides = array<i32>} : memref<8x8x16xf32, #tpu.memory_space<vmem>>, vector<1x8x16xf32>,
    %c0_22 = arith.constant 0 : index
    %c0_23 = arith.constant 0 : index
    %c0_24 = arith.constant 0 : index
    %33 = vector.load %arg10[%c0_22, %c0_23, %c0_24] : memref<8x8x32xf32, #tpu.memory_space<vmem>>, vector<1x8x32xf32>
    %34 = vector.shape_cast %33 : vector<1x8x32xf32> to vector<8x32xf32>
    %35 = vector.shape_cast %16 : vector<8x32xf32> to vector<1x8x32xf32>
    tpu.vector_store %arg10[%c0_22, %c0_23, %c0_24], %35 {strides = array<i32>} : memref<8x8x32xf32, #tpu.memory_space<vmem>>, vector<1x8x32xf32>,
    %c1 = arith.constant 1 : index
    %c0_25 = arith.constant 0 : index
    %c0_26 = arith.constant 0 : index
    %36 = vector.load %arg2[%c1, %c0_25, %c0_26] : memref<8x8x16xf32, #tpu.memory_space<vmem>>, vector<1x8x16xf32>
    %37 = vector.shape_cast %36 : vector<1x8x16xf32> to vector<8x16xf32>
    %cst_27 = arith.constant dense<0.000000e+00> : vector<8x48xf32>
    %38 = tpu.matmul %37, %3, %cst_27 {dimension_numbers = #tpu.dot_dimension_numbers<[1], [0], [0], [1], [0, 0, 1, 1], [], []>} : vector<8x16xf32>, vector<16x48xf32>, vector<8x48xf32> -> vector<8x48xf32>
    %cst_28 = arith.constant dense<0.000000e+00> : vector<8x48xf32>
    %39 = tpu.matmul %16, %4, %cst_28 {dimension_numbers = #tpu.dot_dimension_numbers<[1], [0], [0], [1], [0, 0, 1, 1], [], []>} : vector<8x32xf32>, vector<32x48xf32>, vector<8x48xf32> -> vector<8x48xf32>
    %40 = arith.addf %38, %39 : vector<8x48xf32>
    %41 = vector.broadcast %5 : vector<1x48xf32> to vector<8x48xf32>
    %42 = arith.addf %40, %41 : vector<8x48xf32>
    %43 = vector.extract_strided_slice %42 {offsets = [0, 0], sizes = [8, 32], strides = [1, 1]} : vector<8x48xf32> to vector<8x32xf32>
    %cst_29 = arith.constant dense<0.000000e+00> : vector<8x16xf32>
    %44 = tpu.matmul %42, %6, %cst_29 {dimension_numbers = #tpu.dot_dimension_numbers<[1], [0], [0], [1], [0, 0, 1, 1], [], []>} : vector<8x48xf32>, vector<48x16xf32>, vector<8x16xf32> -> vector<8x16xf32>
    %45 = vector.broadcast %7 : vector<1x16xf32> to vector<8x16xf32>
    %46 = arith.addf %44, %45 : vector<8x16xf32>
    %cst_30 = arith.constant dense<0xFF800000> : vector<8xf32>
    %47 = vector.multi_reduction <maximumf>, %46, %cst_30 [1] : vector<8x16xf32> to vector<8xf32>
    %48 = vector.shape_cast %47 : vector<8xf32> to vector<8x1xf32>
    %49 = vector.broadcast %48 : vector<8x1xf32> to vector<8x16xf32>
    %50 = arith.subf %46, %49 : vector<8x16xf32>
    %51 = math.exp %50 : vector<8x16xf32>
    %cst_31 = arith.constant dense<0.000000e+00> : vector<8xf32>
    %52 = vector.multi_reduction <add>, %51, %cst_31 [1] : vector<8x16xf32> to vector<8xf32>
    %53 = vector.shape_cast %52 : vector<8xf32> to vector<8x1xf32>
    %54 = math.log %53 : vector<8x1xf32>
    %55 = vector.broadcast %54 : vector<8x1xf32> to vector<8x16xf32>
    %56 = arith.subf %50, %55 : vector<8x16xf32>
    %c1_32 = arith.constant 1 : index
    %c0_33 = arith.constant 0 : index
    %c0_34 = arith.constant 0 : index
    %57 = vector.load %arg9[%c1_32, %c0_33, %c0_34] : memref<8x8x16xf32, #tpu.memory_space<vmem>>, vector<1x8x16xf32>
    %58 = vector.shape_cast %57 : vector<1x8x16xf32> to vector<8x16xf32>
    %59 = vector.shape_cast %56 : vector<8x16xf32> to vector<1x8x16xf32>
    tpu.vector_store %arg9[%c1_32, %c0_33, %c0_34], %59 {strides = array<i32>} : memref<8x8x16xf32, #tpu.memory_space<vmem>>, vector<1x8x16xf32>,
    %c1_35 = arith.constant 1 : index
    %c0_36 = arith.constant 0 : index
    %c0_37 = arith.constant 0 : index
    %60 = vector.load %arg10[%c1_35, %c0_36, %c0_37] : memref<8x8x32xf32, #tpu.memory_space<vmem>>, vector<1x8x32xf32>
    %61 = vector.shape_cast %60 : vector<1x8x32xf32> to vector<8x32xf32>
    %62 = vector.shape_cast %43 : vector<8x32xf32> to vector<1x8x32xf32>
    tpu.vector_store %arg10[%c1_35, %c0_36, %c0_37], %62 {strides = array<i32>} : memref<8x8x32xf32, #tpu.memory_space<vmem>>, vector<1x8x32xf32>,
    %c2 = arith.constant 2 : index
    %c0_38 = arith.constant 0 : index
    %c0_39 = arith.constant 0 : index
    %63 = vector.load %arg2[%c2, %c0_38, %c0_39] : memref<8x8x16xf32, #tpu.memory_space<vmem>>, vector<1x8x16xf32>
    %64 = vector.shape_cast %63 : vector<1x8x16xf32> to vector<8x16xf32>
    %cst_40 = arith.constant dense<0.000000e+00> : vector<8x48xf32>
    %65 = tpu.matmul %64, %3, %cst_40 {dimension_numbers = #tpu.dot_dimension_numbers<[1], [0], [0], [1], [0, 0, 1, 1], [], []>} : vector<8x16xf32>, vector<16x48xf32>, vector<8x48xf32> -> vector<8x48xf32>
    %cst_41 = arith.constant dense<0.000000e+00> : vector<8x48xf32>
    %66 = tpu.matmul %43, %4, %cst_41 {dimension_numbers = #tpu.dot_dimension_numbers<[1], [0], [0], [1], [0, 0, 1, 1], [], []>} : vector<8x32xf32>, vector<32x48xf32>, vector<8x48xf32> -> vector<8x48xf32>
    %67 = arith.addf %65, %66 : vector<8x48xf32>
    %68 = vector.broadcast %5 : vector<1x48xf32> to vector<8x48xf32>
    %69 = arith.addf %67, %68 : vector<8x48xf32>
    %70 = vector.extract_strided_slice %69 {offsets = [0, 0], sizes = [8, 32], strides = [1, 1]} : vector<8x48xf32> to vector<8x32xf32>
    %cst_42 = arith.constant dense<0.000000e+00> : vector<8x16xf32>
    %71 = tpu.matmul %69, %6, %cst_42 {dimension_numbers = #tpu.dot_dimension_numbers<[1], [0], [0], [1], [0, 0, 1, 1], [], []>} : vector<8x48xf32>, vector<48x16xf32>, vector<8x16xf32> -> vector<8x16xf32>
    %72 = vector.broadcast %7 : vector<1x16xf32> to vector<8x16xf32>
    %73 = arith.addf %71, %72 : vector<8x16xf32>
    %cst_43 = arith.constant dense<0xFF800000> : vector<8xf32>
    %74 = vector.multi_reduction <maximumf>, %73, %cst_43 [1] : vector<8x16xf32> to vector<8xf32>
    %75 = vector.shape_cast %74 : vector<8xf32> to vector<8x1xf32>
    %76 = vector.broadcast %75 : vector<8x1xf32> to vector<8x16xf32>
    %77 = arith.subf %73, %76 : vector<8x16xf32>
    %78 = math.exp %77 : vector<8x16xf32>
    %cst_44 = arith.constant dense<0.000000e+00> : vector<8xf32>
    %79 = vector.multi_reduction <add>, %78, %cst_44 [1] : vector<8x16xf32> to vector<8xf32>
    %80 = vector.shape_cast %79 : vector<8xf32> to vector<8x1xf32>
    %81 = math.log %80 : vector<8x1xf32>
    %82 = vector.broadcast %81 : vector<8x1xf32> to vector<8x16xf32>
    %83 = arith.subf %77, %82 : vector<8x16xf32>
    %c2_45 = arith.constant 2 : index
    %c0_46 = arith.constant 0 : index
    %c0_47 = arith.constant 0 : index
    %84 = vector.load %arg9[%c2_45, %c0_46, %c0_47] : memref<8x8x16xf32, #tpu.memory_space<vmem>>, vector<1x8x16xf32>
    %85 = vector.shape_cast %84 : vector<1x8x16xf32> to vector<8x16xf32>
    %86 = vector.shape_cast %83 : vector<8x16xf32> to vector<1x8x16xf32>
    tpu.vector_store %arg9[%c2_45, %c0_46, %c0_47], %86 {strides = array<i32>} : memref<8x8x16xf32, #tpu.memory_space<vmem>>, vector<1x8x16xf32>,
    %c2_48 = arith.constant 2 : index
    %c0_49 = arith.constant 0 : index
    %c0_50 = arith.constant 0 : index
    %87 = vector.load %arg10[%c2_48, %c0_49, %c0_50] : memref<8x8x32xf32, #tpu.memory_space<vmem>>, vector<1x8x32xf32>
    %88 = vector.shape_cast %87 : vector<1x8x32xf32> to vector<8x32xf32>
    %89 = vector.shape_cast %70 : vector<8x32xf32> to vector<1x8x32xf32>
    tpu.vector_store %arg10[%c2_48, %c0_49, %c0_50], %89 {strides = array<i32>} : memref<8x8x32xf32, #tpu.memory_space<vmem>>, vector<1x8x32xf32>,
    %c3 = arith.constant 3 : index
    %c0_51 = arith.constant 0 : index
    %c0_52 = arith.constant 0 : index
    %90 = vector.load %arg2[%c3, %c0_51, %c0_52] : memref<8x8x16xf32, #tpu.memory_space<vmem>>, vector<1x8x16xf32>
    %91 = vector.shape_cast %90 : vector<1x8x16xf32> to vector<8x16xf32>
    %cst_53 = arith.constant dense<0.000000e+00> : vector<8x48xf32>
    %92 = tpu.matmul %91, %3, %cst_53 {dimension_numbers = #tpu.dot_dimension_numbers<[1], [0], [0], [1], [0, 0, 1, 1], [], []>} : vector<8x16xf32>, vector<16x48xf32>, vector<8x48xf32> -> vector<8x48xf32>
    %cst_54 = arith.constant dense<0.000000e+00> : vector<8x48xf32>
    %93 = tpu.matmul %70, %4, %cst_54 {dimension_numbers = #tpu.dot_dimension_numbers<[1], [0], [0], [1], [0, 0, 1, 1], [], []>} : vector<8x32xf32>, vector<32x48xf32>, vector<8x48xf32> -> vector<8x48xf32>
    %94 = arith.addf %92, %93 : vector<8x48xf32>
    %95 = vector.broadcast %5 : vector<1x48xf32> to vector<8x48xf32>
    %96 = arith.addf %94, %95 : vector<8x48xf32>
    %97 = vector.extract_strided_slice %96 {offsets = [0, 0], sizes = [8, 32], strides = [1, 1]} : vector<8x48xf32> to vector<8x32xf32>
    %cst_55 = arith.constant dense<0.000000e+00> : vector<8x16xf32>
    %98 = tpu.matmul %96, %6, %cst_55 {dimension_numbers = #tpu.dot_dimension_numbers<[1], [0], [0], [1], [0, 0, 1, 1], [], []>} : vector<8x48xf32>, vector<48x16xf32>, vector<8x16xf32> -> vector<8x16xf32>
    %99 = vector.broadcast %7 : vector<1x16xf32> to vector<8x16xf32>
    %100 = arith.addf %98, %99 : vector<8x16xf32>
    %cst_56 = arith.constant dense<0xFF800000> : vector<8xf32>
    %101 = vector.multi_reduction <maximumf>, %100, %cst_56 [1] : vector<8x16xf32> to vector<8xf32>
    %102 = vector.shape_cast %101 : vector<8xf32> to vector<8x1xf32>
    %103 = vector.broadcast %102 : vector<8x1xf32> to vector<8x16xf32>
    %104 = arith.subf %100, %103 : vector<8x16xf32>
    %105 = math.exp %104 : vector<8x16xf32>
    %cst_57 = arith.constant dense<0.000000e+00> : vector<8xf32>
    %106 = vector.multi_reduction <add>, %105, %cst_57 [1] : vector<8x16xf32> to vector<8xf32>
    %107 = vector.shape_cast %106 : vector<8xf32> to vector<8x1xf32>
    %108 = math.log %107 : vector<8x1xf32>
    %109 = vector.broadcast %108 : vector<8x1xf32> to vector<8x16xf32>
    %110 = arith.subf %104, %109 : vector<8x16xf32>
    %c3_58 = arith.constant 3 : index
    %c0_59 = arith.constant 0 : index
    %c0_60 = arith.constant 0 : index
    %111 = vector.load %arg9[%c3_58, %c0_59, %c0_60] : memref<8x8x16xf32, #tpu.memory_space<vmem>>, vector<1x8x16xf32>
    %112 = vector.shape_cast %111 : vector<1x8x16xf32> to vector<8x16xf32>
    %113 = vector.shape_cast %110 : vector<8x16xf32> to vector<1x8x16xf32>
    tpu.vector_store %arg9[%c3_58, %c0_59, %c0_60], %113 {strides = array<i32>} : memref<8x8x16xf32, #tpu.memory_space<vmem>>, vector<1x8x16xf32>,
    %c3_61 = arith.constant 3 : index
    %c0_62 = arith.constant 0 : index
    %c0_63 = arith.constant 0 : index
    %114 = vector.load %arg10[%c3_61, %c0_62, %c0_63] : memref<8x8x32xf32, #tpu.memory_space<vmem>>, vector<1x8x32xf32>
    %115 = vector.shape_cast %114 : vector<1x8x32xf32> to vector<8x32xf32>
    %116 = vector.shape_cast %97 : vector<8x32xf32> to vector<1x8x32xf32>
    tpu.vector_store %arg10[%c3_61, %c0_62, %c0_63], %116 {strides = array<i32>} : memref<8x8x32xf32, #tpu.memory_space<vmem>>, vector<1x8x32xf32>,
    %c4 = arith.constant 4 : index
    %c0_64 = arith.constant 0 : index
    %c0_65 = arith.constant 0 : index
    %117 = vector.load %arg2[%c4, %c0_64, %c0_65] : memref<8x8x16xf32, #tpu.memory_space<vmem>>, vector<1x8x16xf32>
    %118 = vector.shape_cast %117 : vector<1x8x16xf32> to vector<8x16xf32>
    %cst_66 = arith.constant dense<0.000000e+00> : vector<8x48xf32>
    %119 = tpu.matmul %118, %3, %cst_66 {dimension_numbers = #tpu.dot_dimension_numbers<[1], [0], [0], [1], [0, 0, 1, 1], [], []>} : vector<8x16xf32>, vector<16x48xf32>, vector<8x48xf32> -> vector<8x48xf32>
    %cst_67 = arith.constant dense<0.000000e+00> : vector<8x48xf32>
    %120 = tpu.matmul %97, %4, %cst_67 {dimension_numbers = #tpu.dot_dimension_numbers<[1], [0], [0], [1], [0, 0, 1, 1], [], []>} : vector<8x32xf32>, vector<32x48xf32>, vector<8x48xf32> -> vector<8x48xf32>
    %121 = arith.addf %119, %120 : vector<8x48xf32>
    %122 = vector.broadcast %5 : vector<1x48xf32> to vector<8x48xf32>
    %123 = arith.addf %121, %122 : vector<8x48xf32>
    %124 = vector.extract_strided_slice %123 {offsets = [0, 0], sizes = [8, 32], strides = [1, 1]} : vector<8x48xf32> to vector<8x32xf32>
    %cst_68 = arith.constant dense<0.000000e+00> : vector<8x16xf32>
    %125 = tpu.matmul %123, %6, %cst_68 {dimension_numbers = #tpu.dot_dimension_numbers<[1], [0], [0], [1], [0, 0, 1, 1], [], []>} : vector<8x48xf32>, vector<48x16xf32>, vector<8x16xf32> -> vector<8x16xf32>
    %126 = vector.broadcast %7 : vector<1x16xf32> to vector<8x16xf32>
    %127 = arith.addf %125, %126 : vector<8x16xf32>
    %cst_69 = arith.constant dense<0xFF800000> : vector<8xf32>
    %128 = vector.multi_reduction <maximumf>, %127, %cst_69 [1] : vector<8x16xf32> to vector<8xf32>
    %129 = vector.shape_cast %128 : vector<8xf32> to vector<8x1xf32>
    %130 = vector.broadcast %129 : vector<8x1xf32> to vector<8x16xf32>
    %131 = arith.subf %127, %130 : vector<8x16xf32>
    %132 = math.exp %131 : vector<8x16xf32>
    %cst_70 = arith.constant dense<0.000000e+00> : vector<8xf32>
    %133 = vector.multi_reduction <add>, %132, %cst_70 [1] : vector<8x16xf32> to vector<8xf32>
    %134 = vector.shape_cast %133 : vector<8xf32> to vector<8x1xf32>
    %135 = math.log %134 : vector<8x1xf32>
    %136 = vector.broadcast %135 : vector<8x1xf32> to vector<8x16xf32>
    %137 = arith.subf %131, %136 : vector<8x16xf32>
    %c4_71 = arith.constant 4 : index
    %c0_72 = arith.constant 0 : index
    %c0_73 = arith.constant 0 : index
    %138 = vector.load %arg9[%c4_71, %c0_72, %c0_73] : memref<8x8x16xf32, #tpu.memory_space<vmem>>, vector<1x8x16xf32>
    %139 = vector.shape_cast %138 : vector<1x8x16xf32> to vector<8x16xf32>
    %140 = vector.shape_cast %137 : vector<8x16xf32> to vector<1x8x16xf32>
    tpu.vector_store %arg9[%c4_71, %c0_72, %c0_73], %140 {strides = array<i32>} : memref<8x8x16xf32, #tpu.memory_space<vmem>>, vector<1x8x16xf32>,
    %c4_74 = arith.constant 4 : index
    %c0_75 = arith.constant 0 : index
    %c0_76 = arith.constant 0 : index
    %141 = vector.load %arg10[%c4_74, %c0_75, %c0_76] : memref<8x8x32xf32, #tpu.memory_space<vmem>>, vector<1x8x32xf32>
    %142 = vector.shape_cast %141 : vector<1x8x32xf32> to vector<8x32xf32>
    %143 = vector.shape_cast %124 : vector<8x32xf32> to vector<1x8x32xf32>
    tpu.vector_store %arg10[%c4_74, %c0_75, %c0_76], %143 {strides = array<i32>} : memref<8x8x32xf32, #tpu.memory_space<vmem>>, vector<1x8x32xf32>,
    %c5 = arith.constant 5 : index
    %c0_77 = arith.constant 0 : index
    %c0_78 = arith.constant 0 : index
    %144 = vector.load %arg2[%c5, %c0_77, %c0_78] : memref<8x8x16xf32, #tpu.memory_space<vmem>>, vector<1x8x16xf32>
    %145 = vector.shape_cast %144 : vector<1x8x16xf32> to vector<8x16xf32>
    %cst_79 = arith.constant dense<0.000000e+00> : vector<8x48xf32>
    %146 = tpu.matmul %145, %3, %cst_79 {dimension_numbers = #tpu.dot_dimension_numbers<[1], [0], [0], [1], [0, 0, 1, 1], [], []>} : vector<8x16xf32>, vector<16x48xf32>, vector<8x48xf32> -> vector<8x48xf32>
    %cst_80 = arith.constant dense<0.000000e+00> : vector<8x48xf32>
    %147 = tpu.matmul %124, %4, %cst_80 {dimension_numbers = #tpu.dot_dimension_numbers<[1], [0], [0], [1], [0, 0, 1, 1], [], []>} : vector<8x32xf32>, vector<32x48xf32>, vector<8x48xf32> -> vector<8x48xf32>
    %148 = arith.addf %146, %147 : vector<8x48xf32>
    %149 = vector.broadcast %5 : vector<1x48xf32> to vector<8x48xf32>
    %150 = arith.addf %148, %149 : vector<8x48xf32>
    %151 = vector.extract_strided_slice %150 {offsets = [0, 0], sizes = [8, 32], strides = [1, 1]} : vector<8x48xf32> to vector<8x32xf32>
    %cst_81 = arith.constant dense<0.000000e+00> : vector<8x16xf32>
    %152 = tpu.matmul %150, %6, %cst_81 {dimension_numbers = #tpu.dot_dimension_numbers<[1], [0], [0], [1], [0, 0, 1, 1], [], []>} : vector<8x48xf32>, vector<48x16xf32>, vector<8x16xf32> -> vector<8x16xf32>
    %153 = vector.broadcast %7 : vector<1x16xf32> to vector<8x16xf32>
    %154 = arith.addf %152, %153 : vector<8x16xf32>
    %cst_82 = arith.constant dense<0xFF800000> : vector<8xf32>
    %155 = vector.multi_reduction <maximumf>, %154, %cst_82 [1] : vector<8x16xf32> to vector<8xf32>
    %156 = vector.shape_cast %155 : vector<8xf32> to vector<8x1xf32>
    %157 = vector.broadcast %156 : vector<8x1xf32> to vector<8x16xf32>
    %158 = arith.subf %154, %157 : vector<8x16xf32>
    %159 = math.exp %158 : vector<8x16xf32>
    %cst_83 = arith.constant dense<0.000000e+00> : vector<8xf32>
    %160 = vector.multi_reduction <add>, %159, %cst_83 [1] : vector<8x16xf32> to vector<8xf32>
    %161 = vector.shape_cast %160 : vector<8xf32> to vector<8x1xf32>
    %162 = math.log %161 : vector<8x1xf32>
    %163 = vector.broadcast %162 : vector<8x1xf32> to vector<8x16xf32>
    %164 = arith.subf %158, %163 : vector<8x16xf32>
    %c5_84 = arith.constant 5 : index
    %c0_85 = arith.constant 0 : index
    %c0_86 = arith.constant 0 : index
    %165 = vector.load %arg9[%c5_84, %c0_85, %c0_86] : memref<8x8x16xf32, #tpu.memory_space<vmem>>, vector<1x8x16xf32>
    %166 = vector.shape_cast %165 : vector<1x8x16xf32> to vector<8x16xf32>
    %167 = vector.shape_cast %164 : vector<8x16xf32> to vector<1x8x16xf32>
    tpu.vector_store %arg9[%c5_84, %c0_85, %c0_86], %167 {strides = array<i32>} : memref<8x8x16xf32, #tpu.memory_space<vmem>>, vector<1x8x16xf32>,
    %c5_87 = arith.constant 5 : index
    %c0_88 = arith.constant 0 : index
    %c0_89 = arith.constant 0 : index
    %168 = vector.load %arg10[%c5_87, %c0_88, %c0_89] : memref<8x8x32xf32, #tpu.memory_space<vmem>>, vector<1x8x32xf32>
    %169 = vector.shape_cast %168 : vector<1x8x32xf32> to vector<8x32xf32>
    %170 = vector.shape_cast %151 : vector<8x32xf32> to vector<1x8x32xf32>
    tpu.vector_store %arg10[%c5_87, %c0_88, %c0_89], %170 {strides = array<i32>} : memref<8x8x32xf32, #tpu.memory_space<vmem>>, vector<1x8x32xf32>,
    %c6 = arith.constant 6 : index
    %c0_90 = arith.constant 0 : index
    %c0_91 = arith.constant 0 : index
    %171 = vector.load %arg2[%c6, %c0_90, %c0_91] : memref<8x8x16xf32, #tpu.memory_space<vmem>>, vector<1x8x16xf32>
    %172 = vector.shape_cast %171 : vector<1x8x16xf32> to vector<8x16xf32>
    %cst_92 = arith.constant dense<0.000000e+00> : vector<8x48xf32>
    %173 = tpu.matmul %172, %3, %cst_92 {dimension_numbers = #tpu.dot_dimension_numbers<[1], [0], [0], [1], [0, 0, 1, 1], [], []>} : vector<8x16xf32>, vector<16x48xf32>, vector<8x48xf32> -> vector<8x48xf32>
    %cst_93 = arith.constant dense<0.000000e+00> : vector<8x48xf32>
    %174 = tpu.matmul %151, %4, %cst_93 {dimension_numbers = #tpu.dot_dimension_numbers<[1], [0], [0], [1], [0, 0, 1, 1], [], []>} : vector<8x32xf32>, vector<32x48xf32>, vector<8x48xf32> -> vector<8x48xf32>
    %175 = arith.addf %173, %174 : vector<8x48xf32>
    %176 = vector.broadcast %5 : vector<1x48xf32> to vector<8x48xf32>
    %177 = arith.addf %175, %176 : vector<8x48xf32>
    %178 = vector.extract_strided_slice %177 {offsets = [0, 0], sizes = [8, 32], strides = [1, 1]} : vector<8x48xf32> to vector<8x32xf32>
    %cst_94 = arith.constant dense<0.000000e+00> : vector<8x16xf32>
    %179 = tpu.matmul %177, %6, %cst_94 {dimension_numbers = #tpu.dot_dimension_numbers<[1], [0], [0], [1], [0, 0, 1, 1], [], []>} : vector<8x48xf32>, vector<48x16xf32>, vector<8x16xf32> -> vector<8x16xf32>
    %180 = vector.broadcast %7 : vector<1x16xf32> to vector<8x16xf32>
    %181 = arith.addf %179, %180 : vector<8x16xf32>
    %cst_95 = arith.constant dense<0xFF800000> : vector<8xf32>
    %182 = vector.multi_reduction <maximumf>, %181, %cst_95 [1] : vector<8x16xf32> to vector<8xf32>
    %183 = vector.shape_cast %182 : vector<8xf32> to vector<8x1xf32>
    %184 = vector.broadcast %183 : vector<8x1xf32> to vector<8x16xf32>
    %185 = arith.subf %181, %184 : vector<8x16xf32>
    %186 = math.exp %185 : vector<8x16xf32>
    %cst_96 = arith.constant dense<0.000000e+00> : vector<8xf32>
    %187 = vector.multi_reduction <add>, %186, %cst_96 [1] : vector<8x16xf32> to vector<8xf32>
    %188 = vector.shape_cast %187 : vector<8xf32> to vector<8x1xf32>
    %189 = math.log %188 : vector<8x1xf32>
    %190 = vector.broadcast %189 : vector<8x1xf32> to vector<8x16xf32>
    %191 = arith.subf %185, %190 : vector<8x16xf32>
    %c6_97 = arith.constant 6 : index
    %c0_98 = arith.constant 0 : index
    %c0_99 = arith.constant 0 : index
    %192 = vector.load %arg9[%c6_97, %c0_98, %c0_99] : memref<8x8x16xf32, #tpu.memory_space<vmem>>, vector<1x8x16xf32>
    %193 = vector.shape_cast %192 : vector<1x8x16xf32> to vector<8x16xf32>
    %194 = vector.shape_cast %191 : vector<8x16xf32> to vector<1x8x16xf32>
    tpu.vector_store %arg9[%c6_97, %c0_98, %c0_99], %194 {strides = array<i32>} : memref<8x8x16xf32, #tpu.memory_space<vmem>>, vector<1x8x16xf32>,
    %c6_100 = arith.constant 6 : index
    %c0_101 = arith.constant 0 : index
    %c0_102 = arith.constant 0 : index
    %195 = vector.load %arg10[%c6_100, %c0_101, %c0_102] : memref<8x8x32xf32, #tpu.memory_space<vmem>>, vector<1x8x32xf32>
    %196 = vector.shape_cast %195 : vector<1x8x32xf32> to vector<8x32xf32>
    %197 = vector.shape_cast %178 : vector<8x32xf32> to vector<1x8x32xf32>
    tpu.vector_store %arg10[%c6_100, %c0_101, %c0_102], %197 {strides = array<i32>} : memref<8x8x32xf32, #tpu.memory_space<vmem>>, vector<1x8x32xf32>,
    %c7 = arith.constant 7 : index
    %c0_103 = arith.constant 0 : index
    %c0_104 = arith.constant 0 : index
    %198 = vector.load %arg2[%c7, %c0_103, %c0_104] : memref<8x8x16xf32, #tpu.memory_space<vmem>>, vector<1x8x16xf32>
    %199 = vector.shape_cast %198 : vector<1x8x16xf32> to vector<8x16xf32>
    %cst_105 = arith.constant dense<0.000000e+00> : vector<8x48xf32>
    %200 = tpu.matmul %199, %3, %cst_105 {dimension_numbers = #tpu.dot_dimension_numbers<[1], [0], [0], [1], [0, 0, 1, 1], [], []>} : vector<8x16xf32>, vector<16x48xf32>, vector<8x48xf32> -> vector<8x48xf32>
    %cst_106 = arith.constant dense<0.000000e+00> : vector<8x48xf32>
    %201 = tpu.matmul %178, %4, %cst_106 {dimension_numbers = #tpu.dot_dimension_numbers<[1], [0], [0], [1], [0, 0, 1, 1], [], []>} : vector<8x32xf32>, vector<32x48xf32>, vector<8x48xf32> -> vector<8x48xf32>
    %202 = arith.addf %200, %201 : vector<8x48xf32>
    %203 = vector.broadcast %5 : vector<1x48xf32> to vector<8x48xf32>
    %204 = arith.addf %202, %203 : vector<8x48xf32>
    %205 = vector.extract_strided_slice %204 {offsets = [0, 0], sizes = [8, 32], strides = [1, 1]} : vector<8x48xf32> to vector<8x32xf32>
    %cst_107 = arith.constant dense<0.000000e+00> : vector<8x16xf32>
    %206 = tpu.matmul %204, %6, %cst_107 {dimension_numbers = #tpu.dot_dimension_numbers<[1], [0], [0], [1], [0, 0, 1, 1], [], []>} : vector<8x48xf32>, vector<48x16xf32>, vector<8x16xf32> -> vector<8x16xf32>
    %207 = vector.broadcast %7 : vector<1x16xf32> to vector<8x16xf32>
    %208 = arith.addf %206, %207 : vector<8x16xf32>
    %cst_108 = arith.constant dense<0xFF800000> : vector<8xf32>
    %209 = vector.multi_reduction <maximumf>, %208, %cst_108 [1] : vector<8x16xf32> to vector<8xf32>
    %210 = vector.shape_cast %209 : vector<8xf32> to vector<8x1xf32>
    %211 = vector.broadcast %210 : vector<8x1xf32> to vector<8x16xf32>
    %212 = arith.subf %208, %211 : vector<8x16xf32>
    %213 = math.exp %212 : vector<8x16xf32>
    %cst_109 = arith.constant dense<0.000000e+00> : vector<8xf32>
    %214 = vector.multi_reduction <add>, %213, %cst_109 [1] : vector<8x16xf32> to vector<8xf32>
    %215 = vector.shape_cast %214 : vector<8xf32> to vector<8x1xf32>
    %216 = math.log %215 : vector<8x1xf32>
    %217 = vector.broadcast %216 : vector<8x1xf32> to vector<8x16xf32>
    %218 = arith.subf %212, %217 : vector<8x16xf32>
    %c7_110 = arith.constant 7 : index
    %c0_111 = arith.constant 0 : index
    %c0_112 = arith.constant 0 : index
    %219 = vector.load %arg9[%c7_110, %c0_111, %c0_112] : memref<8x8x16xf32, #tpu.memory_space<vmem>>, vector<1x8x16xf32>
    %220 = vector.shape_cast %219 : vector<1x8x16xf32> to vector<8x16xf32>
    %221 = vector.shape_cast %218 : vector<8x16xf32> to vector<1x8x16xf32>
    tpu.vector_store %arg9[%c7_110, %c0_111, %c0_112], %221 {strides = array<i32>} : memref<8x8x16xf32, #tpu.memory_space<vmem>>, vector<1x8x16xf32>,
    %c7_113 = arith.constant 7 : index
    %c0_114 = arith.constant 0 : index
    %c0_115 = arith.constant 0 : index
    %222 = vector.load %arg10[%c7_113, %c0_114, %c0_115] : memref<8x8x32xf32, #tpu.memory_space<vmem>>, vector<1x8x32xf32>
    %223 = vector.shape_cast %222 : vector<1x8x32xf32> to vector<8x32xf32>
    %224 = vector.shape_cast %205 : vector<8x32xf32> to vector<1x8x32xf32>
    tpu.vector_store %arg10[%c7_113, %c0_114, %c0_115], %224 {strides = array<i32>} : memref<8x8x32xf32, #tpu.memory_space<vmem>>, vector<1x8x32xf32>,
    %c0_116 = arith.constant 0 : index
    %c0_117 = arith.constant 0 : index
    %225 = vector.load %arg11[%c0_116, %c0_117] : memref<8x32xf32, #tpu.memory_space<vmem>>, vector<8x32xf32>
    tpu.vector_store %arg11[%c0_116, %c0_117], %205 {strides = array<i32>} : memref<8x32xf32, #tpu.memory_space<vmem>>, vector<8x32xf32>,
    return
  }
  func.func @transform_0(%arg0: i32, %arg1: i32) -> (i32, i32, i32) {
    %c0_i32 = arith.constant 0 : i32
    %c0_i32_0 = arith.constant 0 : i32
    return %arg1, %arg0, %c0_i32 : i32, i32, i32
  }
  func.func @transform_1(%arg0: i32, %arg1: i32) -> (i32, i32) {
    %c0_i32 = arith.constant 0 : i32
    %c0_i32_0 = arith.constant 0 : i32
    return %arg0, %c0_i32 : i32, i32
  }
  func.func @transform_2(%arg0: i32, %arg1: i32) -> (i32, i32) {
    %c0_i32 = arith.constant 0 : i32
    %c0_i32_0 = arith.constant 0 : i32
    %c0_i32_1 = arith.constant 0 : i32
    return %c0_i32, %c0_i32_0 : i32, i32
  }
  func.func @transform_3(%arg0: i32, %arg1: i32) -> (i32, i32) {
    %c0_i32 = arith.constant 0 : i32
    %c0_i32_0 = arith.constant 0 : i32
    %c0_i32_1 = arith.constant 0 : i32
    return %c0_i32, %c0_i32_0 : i32, i32
  }
  func.func @transform_4(%arg0: i32, %arg1: i32) -> (i32, i32) {
    %c0_i32 = arith.constant 0 : i32
    %c0_i32_0 = arith.constant 0 : i32
    %c0_i32_1 = arith.constant 0 : i32
    return %c0_i32, %c0_i32_0 : i32, i32
  }
  func.func @transform_5(%arg0: i32, %arg1: i32) -> (i32, i32) {
    %c0_i32 = arith.constant 0 : i32
    %c0_i32_0 = arith.constant 0 : i32
    %c0_i32_1 = arith.constant 0 : i32
    return %c0_i32, %c0_i32_0 : i32, i32
  }
  func.func @transform_6(%arg0: i32, %arg1: i32) -> (i32, i32) {
    %c0_i32 = arith.constant 0 : i32
    %c0_i32_0 = arith.constant 0 : i32
    %c0_i32_1 = arith.constant 0 : i32
    return %c0_i32, %c0_i32_0 : i32, i32
  }
  func.func @transform_7(%arg0: i32, %arg1: i32) -> (i32, i32, i32) {
    %c0_i32 = arith.constant 0 : i32
    %c0_i32_0 = arith.constant 0 : i32
    return %arg1, %arg0, %c0_i32 : i32, i32, i32
  }
  func.func @transform_8(%arg0: i32, %arg1: i32) -> (i32, i32, i32) {
    %c0_i32 = arith.constant 0 : i32
    %c0_i32_0 = arith.constant 0 : i32
    return %arg1, %arg0, %c0_i32 : i32, i32, i32
  }
}

</mosaic_0001>

<llo_original>
// kernel: rnn_sequence_forward.1
$region0: #{rnn_sequence_forward.1}
  #allocation0 [shape = 'u32[]', space=smem, size = 0x4, offset = 0x4, fixed_abs, tag = 'smem constant byte address 0x4 - core index']
  #allocation1 [shape = 'u32[72,128]{1,0:T(1,128)}', space=vmem, size = 0x9000, scoped, tag = 'internal scratch']
  #allocation2 [shape = 'f32[8,32]{1,0:T(8,128)}', space=vmem, size = 0x1000, scoped, tag = 'scratch operand']
  %s0 = inlined_call_operand.vmem [shape: f32[8,16,16], index: 0, kind: input, shape index: {}]
  %s1 = inlined_call_operand.vmem [shape: f32[16,32], index: 1, kind: input, shape index: {}]
  %s2 = inlined_call_operand.vmem [shape: f32[16,48], index: 2, kind: input, shape index: {}]
  %s3 = inlined_call_operand.vmem [shape: f32[32,48], index: 3, kind: input, shape index: {}]
  %s4 = inlined_call_operand.vmem [shape: f32[1,48], index: 4, kind: input, shape index: {}]
  %s5 = inlined_call_operand.vmem [shape: f32[48,16], index: 5, kind: input, shape index: {}]
  %s6 = inlined_call_operand.vmem [shape: f32[1,16], index: 6, kind: input, shape index: {}]
  %s7 = inlined_call_operand.hbm [shape: f32[8,16,16], index: 7, kind: output, shape index: {0}]
  %s8 = inlined_call_operand.hbm [shape: f32[8,16,32], index: 8, kind: output, shape index: {1}]
  %9 = xla_tuple %s7, %s8
  %s10 = sld [smem:[#allocation0]]
  $region111: #{rnn_sequence_forward.1} parent=0
    _
  %s12 = ssub.s32 1, %s10
  %s13 = scalar_select 0, %s12, %s10
  $region1: #{rnn_sequence_forward.1} parent=0
    #allocation3 [shape = 'u8[65536]{0}', space=vmem, size = 0x10000, scoped, tag = 'input window, operand 0']
    #allocation4 [shape = 'u8[65536]{0}', space=vmem, size = 0x10000, scoped, tag = 'output window, operand 0']
    #allocation5 [shape = 's32[2]{0}', space=sflag, size = 0x8, scoped, tag = 'scoped memory for rnn_sequence_forward.1']
    #allocation6 [shape = 'u8[65536]{0}', space=vmem, size = 0x10000, scoped, tag = 'output window, operand 1']
    #allocation7 [shape = 's32[2]{0}', space=sflag, size = 0x8, scoped, tag = 'scoped memory for rnn_sequence_forward.1']
    %14 = vsyncpa [#allocation5], 0
    %s15 = scalar_lea.sflag [#allocation5], 1
    %16 = vsyncpa %s15, 0
    %17 = vsyncpa [#allocation7], 0
    %s18 = scalar_lea.sflag [#allocation7], 1
    %19 = vsyncpa %s18, 0
    loop: start=0, step=1, limit=4
    $region2: #{rnn_sequence_forward.1} parent=1 // loop_pre_header
      _
    $region3: #{rnn_sequence_forward.1} parent=1 // loop_header
      %s21 = sphi 0, %s25
      %p22 = scmp.ge.s32.totalorder %s21, 4
      %s28 = sphi 0, %s40
      %s29 = sphi 0, %s36
      %s30 = sphi 0, %s28
      %s31 = sphi 0, %s29
      %s32 = sphi 0, %s30
      %s33 = sphi 0, %s31
      %s45 = sphi 0, %s47
      %s48 = sphi 0, %s45
      %s49 = sphi 0, %s48
      %s65 = sphi 0, %s49
      %s71 = sphi 0, %s73
      %s74 = sphi 0, %s71
      %s75 = sphi 0, %s74
      %s91 = sphi 0, %s75
      %s95 = sphi 0, %s95
      %s97 = sphi 0, %s95
      %s98 = sphi 0, %s97
      %s112 = sphi 0, %s98
      %s116 = sphi 0, %s116
      %s118 = sphi 0, %s116
      %s119 = sphi 0, %s118
      %s133 = sphi 0, %s119
      %s137 = sphi 0, %s137
      %s139 = sphi 0, %s137
      %s140 = sphi 0, %s139
      %s154 = sphi 0, %s140
      %s158 = sphi 0, %s158
      %s160 = sphi 0, %s158
      %s161 = sphi 0, %s160
      %s175 = sphi 0, %s161
      %s179 = sphi 0, %s179
      %s181 = sphi 0, %s179
      %s182 = sphi 0, %s181
      %s196 = sphi 0, %s182
      %s204 = sphi 0, %s206
      %s207 = sphi 0, %s204
      %s208 = sphi 0, %s207
      %s224 = sphi 0, %s208
      %s232 = sphi 0, %s234
      %s235 = sphi 0, %s232
      %s236 = sphi 0, %s235
      %s252 = sphi 0, %s236
    $region4: #{rnn_sequence_forward.1} parent=1 // loop_header_branch
      %24 = sbr.rel (%p22) target = $region8
    $region5: #{rnn_sequence_forward.1} parent=1 // loop_body
      %s26 = ssub.s32 %s21, 1
      %s27 = ssub.s32 %s21, 2
      %s34 = sadd.s32 1, %s29
      %p35 = scmp.ge.s32.totalorder %s34, 1
      %s36 = scalar_select %p35, 0, %s34
      %s37 = sadd.s32 1, %s28
      %s38 = scalar_select %p35, %s37, %s28
      %p39 = scmp.ge.s32.totalorder %s38, 2
      %s40 = scalar_select %p39, 0, %s38
      %s41 = ssub.s32 %s29, %s36
      %s42 = ssub.s32 %s28, %s40
      %s43 = sor.u32 %s41, %s42
      %p44 = scmp.eq.s32.totalorder %s43, 0
      %s46 = sadd.s32 %s45, 1
      %s47 = scalar_select %p44, %s45, %s46
      %p50 = pneg %p44
      %p51 = scmp.eq.s32.totalorder %s21, 1
      %p52 = por %p50, %p51
      %p53 = scmp.ne.s32.totalorder %s45, %s48
      %p54 = scmp.eq.s32.totalorder %s21, 0
      %p55 = por %p53, %p54
      %p56 = scmp.ne.s32.totalorder %s45, %s48
      %p57 = scmp.eq.s32.totalorder %s26, 1
      %p58 = por %p56, %p57
      %p59 = scmp.ne.s32.totalorder %s48, %s49
      %p60 = scmp.eq.s32.totalorder %s26, 0
      %p61 = por %p59, %p60
      %p62 = scmp.ne.s32.totalorder %s48, %s49
      %p63 = scmp.eq.s32.totalorder %s27, 1
      %p64 = por %p62, %p63
      %p66 = scmp.ne.s32.totalorder %s49, %s65
      %p67 = scmp.eq.s32.totalorder %s27, 0
      %p68 = por %p66, %p67
      %s69 = ssub.s32 %s28, %s40
      %p70 = scmp.eq.s32.totalorder %s69, 0
      %s72 = sadd.s32 %s71, 1
      %s73 = scalar_select %p70, %s71, %s72
      %p76 = pneg %p70
      %p77 = scmp.eq.s32.totalorder %s21, 1
      %p78 = por %p76, %p77
      %p79 = scmp.ne.s32.totalorder %s71, %s74
      %p80 = scmp.eq.s32.totalorder %s21, 0
      %p81 = por %p79, %p80
      %p82 = scmp.ne.s32.totalorder %s71, %s74
      %p83 = scmp.eq.s32.totalorder %s26, 1
      %p84 = por %p82, %p83
      %p85 = scmp.ne.s32.totalorder %s74, %s75
      %p86 = scmp.eq.s32.totalorder %s26, 0
      %p87 = por %p85, %p86
      %p88 = scmp.ne.s32.totalorder %s74, %s75
      %p89 = scmp.eq.s32.totalorder %s27, 1
      %p90 = por %p88, %p89
      %p92 = scmp.ne.s32.totalorder %s75, %s91
      %p93 = scmp.eq.s32.totalorder %s27, 0
      %p94 = por %p92, %p93
      %s96 = sadd.s32 %s95, 1
      %p99 = scmp.eq.s32.totalorder %s21, 1
      %p100 = scmp.ne.s32.totalorder %s95, %s97
      %p101 = scmp.eq.s32.totalorder %s21, 0
      %p102 = por %p100, %p101
      %p103 = scmp.ne.s32.totalorder %s95, %s97
      %p104 = scmp.eq.s32.totalorder %s26, 1
      %p105 = por %p103, %p104
      %p106 = scmp.ne.s32.totalorder %s97, %s98
      %p107 = scmp.eq.s32.totalorder %s26, 0
      %p108 = por %p106, %p107
      %p109 = scmp.ne.s32.totalorder %s97, %s98
      %p110 = scmp.eq.s32.totalorder %s27, 1
      %p111 = por %p109, %p110
      %p113 = scmp.ne.s32.totalorder %s98, %s112
      %p114 = scmp.eq.s32.totalorder %s27, 0
      %p115 = por %p113, %p114
      %s117 = sadd.s32 %s116, 1
      %p120 = scmp.eq.s32.totalorder %s21, 1
      %p121 = scmp.ne.s32.totalorder %s116, %s118
      %p122 = scmp.eq.s32.totalorder %s21, 0
      %p123 = por %p121, %p122
      %p124 = scmp.ne.s32.totalorder %s116, %s118
      %p125 = scmp.eq.s32.totalorder %s26, 1
      %p126 = por %p124, %p125
      %p127 = scmp.ne.s32.totalorder %s118, %s119
      %p128 = scmp.eq.s32.totalorder %s26, 0
      %p129 = por %p127, %p128
      %p130 = scmp.ne.s32.totalorder %s118, %s119
      %p131 = scmp.eq.s32.totalorder %s27, 1
      %p132 = por %p130, %p131
      %p134 = scmp.ne.s32.totalorder %s119, %s133
      %p135 = scmp.eq.s32.totalorder %s27, 0
      %p136 = por %p134, %p135
      %s138 = sadd.s32 %s137, 1
      %p141 = scmp.eq.s32.totalorder %s21, 1
      %p142 = scmp.ne.s32.totalorder %s137, %s139
      %p143 = scmp.eq.s32.totalorder %s21, 0
      %p144 = por %p142, %p143
      %p145 = scmp.ne.s32.totalorder %s137, %s139
      %p146 = scmp.eq.s32.totalorder %s26, 1
      %p147 = por %p145, %p146
      %p148 = scmp.ne.s32.totalorder %s139, %s140
      %p149 = scmp.eq.s32.totalorder %s26, 0
      %p150 = por %p148, %p149
      %p151 = scmp.ne.s32.totalorder %s139, %s140
      %p152 = scmp.eq.s32.totalorder %s27, 1
      %p153 = por %p151, %p152
      %p155 = scmp.ne.s32.totalorder %s140, %s154
      %p156 = scmp.eq.s32.totalorder %s27, 0
      %p157 = por %p155, %p156
      %s159 = sadd.s32 %s158, 1
      %p162 = scmp.eq.s32.totalorder %s21, 1
      %p163 = scmp.ne.s32.totalorder %s158, %s160
      %p164 = scmp.eq.s32.totalorder %s21, 0
      %p165 = por %p163, %p164
      %p166 = scmp.ne.s32.totalorder %s158, %s160
      %p167 = scmp.eq.s32.totalorder %s26, 1
      %p168 = por %p166, %p167
      %p169 = scmp.ne.s32.totalorder %s160, %s161
      %p170 = scmp.eq.s32.totalorder %s26, 0
      %p171 = por %p169, %p170
      %p172 = scmp.ne.s32.totalorder %s160, %s161
      %p173 = scmp.eq.s32.totalorder %s27, 1
      %p174 = por %p172, %p173
      %p176 = scmp.ne.s32.totalorder %s161, %s175
      %p177 = scmp.eq.s32.totalorder %s27, 0
      %p178 = por %p176, %p177
      %s180 = sadd.s32 %s179, 1
      %p183 = scmp.eq.s32.totalorder %s21, 1
      %p184 = scmp.ne.s32.totalorder %s179, %s181
      %p185 = scmp.eq.s32.totalorder %s21, 0
      %p186 = por %p184, %p185
      %p187 = scmp.ne.s32.totalorder %s179, %s181
      %p188 = scmp.eq.s32.totalorder %s26, 1
      %p189 = por %p187, %p188
      %p190 = scmp.ne.s32.totalorder %s181, %s182
      %p191 = scmp.eq.s32.totalorder %s26, 0
      %p192 = por %p190, %p191
      %p193 = scmp.ne.s32.totalorder %s181, %s182
      %p194 = scmp.eq.s32.totalorder %s27, 1
      %p195 = por %p193, %p194
      %p197 = scmp.ne.s32.totalorder %s182, %s196
      %p198 = scmp.eq.s32.totalorder %s27, 0
      %p199 = por %p197, %p198
      %s200 = ssub.s32 %s29, %s36
      %s201 = ssub.s32 %s28, %s40
      %s202 = sor.u32 %s200, %s201
      %p203 = scmp.eq.s32.totalorder %s202, 0
      %s205 = sadd.s32 %s204, 1
      %s206 = scalar_select %p203, %s204, %s205
      %p209 = pneg %p203
      %p210 = scmp.eq.s32.totalorder %s21, 1
      %p211 = por %p209, %p210
      %p212 = scmp.ne.s32.totalorder %s204, %s207
      %p213 = scmp.eq.s32.totalorder %s21, 0
      %p214 = por %p212, %p213
      %p215 = scmp.ne.s32.totalorder %s204, %s207
      %p216 = scmp.eq.s32.totalorder %s26, 1
      %p217 = por %p215, %p216
      %p218 = scmp.ne.s32.totalorder %s207, %s208
      %p219 = scmp.eq.s32.totalorder %s26, 0
      %p220 = por %p218, %p219
      %p221 = scmp.ne.s32.totalorder %s207, %s208
      %p222 = scmp.eq.s32.totalorder %s27, 1
      %p223 = por %p221, %p222
      %p225 = scmp.ne.s32.totalorder %s208, %s224
      %p226 = scmp.eq.s32.totalorder %s27, 0
      %p227 = por %p225, %p226
      %s228 = ssub.s32 %s29, %s36
      %s229 = ssub.s32 %s28, %s40
      %s230 = sor.u32 %s228, %s229
      %p231 = scmp.eq.s32.totalorder %s230, 0
      %s233 = sadd.s32 %s232, 1
      %s234 = scalar_select %p231, %s232, %s233
      %p237 = pneg %p231
      %p238 = scmp.eq.s32.totalorder %s21, 1
      %p239 = por %p237, %p238
      %p240 = scmp.ne.s32.totalorder %s232, %s235
      %p241 = scmp.eq.s32.totalorder %s21, 0
      %p242 = por %p240, %p241
      %p243 = scmp.ne.s32.totalorder %s232, %s235
      %p244 = scmp.eq.s32.totalorder %s26, 1
      %p245 = por %p243, %p244
      %p246 = scmp.ne.s32.totalorder %s235, %s236
      %p247 = scmp.eq.s32.totalorder %s26, 0
      %p248 = por %p246, %p247
      %p249 = scmp.ne.s32.totalorder %s235, %s236
      %p250 = scmp.eq.s32.totalorder %s27, 1
      %p251 = por %p249, %p250
      %p253 = scmp.ne.s32.totalorder %s236, %s252
      %p254 = scmp.eq.s32.totalorder %s27, 0
      %p255 = por %p253, %p254
      %p256 = scmp.le.s32.totalorder 1, %s21
      %p257 = scmp.lt.s32.totalorder %s21, 3
      %p258 = pnand %p256, %p257
      %p259 = pneg %p258
      // Predicated region
      $region9: #{rnn_sequence_forward.1} parent=5 // pred_check
        _
      $region10: #{rnn_sequence_forward.1} parent=5 // pred_check_branch
        %261 = sbr.rel (%p258) target = $region12
      $region11: #{rnn_sequence_forward.1} parent=5 // pred_region
        %s262 = ssub.s32 %s21, 1
        // Predicated region
        $region13: #{rnn_sequence_forward.1} parent=11 // pred_check
          %p263 = pneg %p108
        $region14: #{rnn_sequence_forward.1} parent=11 // pred_check_branch
          %265 = sbr.rel (%p263) target = $region16
        $region15: #{rnn_sequence_forward.1} parent=11 // pred_region
          _
        $region16: #{rnn_sequence_forward.1} parent=11 // pred_fallthru
          _
        // Predicated region
        $region17: #{rnn_sequence_forward.1} parent=11 // pred_check
          %p266 = pneg %p129
        $region18: #{rnn_sequence_forward.1} parent=11 // pred_check_branch
          %268 = sbr.rel (%p266) target = $region20
        $region19: #{rnn_sequence_forward.1} parent=11 // pred_region
          _
        $region20: #{rnn_sequence_forward.1} parent=11 // pred_fallthru
          _
        // Predicated region
        $region21: #{rnn_sequence_forward.1} parent=11 // pred_check
          %p269 = pneg %p150
        $region22: #{rnn_sequence_forward.1} parent=11 // pred_check_branch
          %271 = sbr.rel (%p269) target = $region24
        $region23: #{rnn_sequence_forward.1} parent=11 // pred_region
          _
        $region24: #{rnn_sequence_forward.1} parent=11 // pred_fallthru
          _
        // Predicated region
        $region25: #{rnn_sequence_forward.1} parent=11 // pred_check
          %p272 = pneg %p171
        $region26: #{rnn_sequence_forward.1} parent=11 // pred_check_branch
          %274 = sbr.rel (%p272) target = $region28
        $region27: #{rnn_sequence_forward.1} parent=11 // pred_region
          _
        $region28: #{rnn_sequence_forward.1} parent=11 // pred_fallthru
          _
        // Predicated region
        $region29: #{rnn_sequence_forward.1} parent=11 // pred_check
          %p275 = pneg %p192
        $region30: #{rnn_sequence_forward.1} parent=11 // pred_check_branch
          %277 = sbr.rel (%p275) target = $region32
        $region31: #{rnn_sequence_forward.1} parent=11 // pred_region
          _
        $region32: #{rnn_sequence_forward.1} parent=11 // pred_fallthru
          _
      $region12: #{rnn_sequence_forward.1} parent=5 // pred_fallthru
        _
      %p278 = scmp.lt.s32.totalorder %s21, 2
      // Predicated region
      $region33: #{rnn_sequence_forward.1} parent=5 // pred_check
        %p279 = pneg %p278
      $region34: #{rnn_sequence_forward.1} parent=5 // pred_check_branch
        %281 = sbr.rel (%p279) target = $region36
      $region35: #{rnn_sequence_forward.1} parent=5 // pred_region
        // Predicated region
        $region37: #{rnn_sequence_forward.1} parent=35 // pred_check
          %p282 = pneg %p55
        $region38: #{rnn_sequence_forward.1} parent=35 // pred_check_branch
          %284 = sbr.rel (%p282) target = $region40
        $region39: #{rnn_sequence_forward.1} parent=35 // pred_region
          %s285 = sand.u32 %s45, 1
          %s286 = sand.u32 %s45, 1
          %s287 = smul.addr %s286, 64
          %s288 = scalar_lea.vmem [#allocation3], %s287
          %s289 = smul.u32 8, %s29
          %s290 = smul.addr %s289, 2
          %s291 = sadd.s32 %s28, %s290
          %s292 = smul.addr %s291, 8
          %s293 = scalar_lea.vmem %s0, %s292
          // Predicated region
          $region41: #{rnn_sequence_forward.1} parent=39 // pred_check
            _
          $region42: #{rnn_sequence_forward.1} parent=39 // pred_check_branch
            %295 = sbr.rel (0) target = $region44
          $region43: #{rnn_sequence_forward.1} parent=39 // pred_region
            // Predicated region
            $region45: #{rnn_sequence_forward.1} parent=43 // pred_check
              _
            $region46: #{rnn_sequence_forward.1} parent=43 // pred_check_branch
              %297 = sbr.rel (0) target = $region48
            $region47: #{rnn_sequence_forward.1} parent=43 // pred_region
              // Predicated region
              $region60: #{rnn_sequence_forward.1} parent=47 // pred_check
                _
              $region61: #{rnn_sequence_forward.1} parent=47 // pred_check_branch
                %327 = sbr.rel (0) target = $region63
              $region62: #{rnn_sequence_forward.1} parent=47 // pred_region
                loop: start=0, step=1, limit=1
                $region64: #{rnn_sequence_forward.1} parent=62 // loop_pre_header
                  _
                $region65: #{rnn_sequence_forward.1} parent=62 // loop_header
                  %s329 = sphi 0, %s333
                  %p330 = scmp.ge.s32.totalorder %s329, 1
                  %s334 = sphi %s293, %s293
                  %s335 = sphi %s288, %s288
                $region66: #{rnn_sequence_forward.1} parent=62 // loop_header_branch
                  %332 = sbr.rel (%p330) target = $region70
                $region67: #{rnn_sequence_forward.1} parent=62 // loop_body
                  %v336 = vld [vmem:[%s334] sm:$0xff]
                  %337 = vst [vmem:[%s335] sm:$0xff] %v336
                  %v338 = vld [vmem:[%s334 + $0x10] sm:$0xff]
                  %339 = vst [vmem:[%s335 + $0x8] sm:$0xff] %v338
                  %v340 = vld [vmem:[%s334 + $0x20] sm:$0xff]
                  %341 = vst [vmem:[%s335 + $0x10] sm:$0xff] %v340
                  %v342 = vld [vmem:[%s334 + $0x30] sm:$0xff]
                  %343 = vst [vmem:[%s335 + $0x18] sm:$0xff] %v342
                  %v344 = vld [vmem:[%s334 + $0x40] sm:$0xff]
                  %345 = vst [vmem:[%s335 + $0x20] sm:$0xff] %v344
                  %v346 = vld [vmem:[%s334 + $0x50] sm:$0xff]
                  %347 = vst [vmem:[%s335 + $0x28] sm:$0xff] %v346
                  %v348 = vld [vmem:[%s334 + $0x60] sm:$0xff]
                  %349 = vst [vmem:[%s335 + $0x30] sm:$0xff] %v348
                  %v350 = vld [vmem:[%s334 + $0x70] sm:$0xff]
                  %351 = vst [vmem:[%s335 + $0x38] sm:$0xff] %v350
                $region68: #{rnn_sequence_forward.1} parent=62 // loop_footer
                  %s333 = sadd.s32 1, %s329
                $region69: #{rnn_sequence_forward.1} parent=62 // loop_footer_branch
                  %328 = sbr.rel target = $region65
                $region70: #{rnn_sequence_forward.1} parent=62 // loop_exit
                  _
              $region63: #{rnn_sequence_forward.1} parent=47 // pred_fallthru
                _
              // Predicated region
              $region71: #{rnn_sequence_forward.1} parent=47 // pred_check
                _
              $region72: #{rnn_sequence_forward.1} parent=47 // pred_check_branch
                %353 = sbr.rel target = $region74
              $region73: #{rnn_sequence_forward.1} parent=47 // pred_region
                _
              $region74: #{rnn_sequence_forward.1} parent=47 // pred_fallthru
                _
            $region48: #{rnn_sequence_forward.1} parent=43 // pred_fallthru
              _
            // Predicated region
            $region49: #{rnn_sequence_forward.1} parent=43 // pred_check
              _
            $region50: #{rnn_sequence_forward.1} parent=43 // pred_check_branch
              %299 = sbr.rel target = $region52
            $region51: #{rnn_sequence_forward.1} parent=43 // pred_region
              %s301 = ssub.s32 256, 1
              loop: start=0, step=1, limit=1
              $region53: #{rnn_sequence_forward.1} parent=51 // loop_pre_header
                _
              $region54: #{rnn_sequence_forward.1} parent=51 // loop_header
                %s303 = sphi 0, %s307
                %p304 = scmp.ge.s32.totalorder %s303, 1
                %s308 = sphi %s293, %s293
                %s309 = sphi %s288, %s288
              $region55: #{rnn_sequence_forward.1} parent=51 // loop_header_branch
                %306 = sbr.rel (%p304) target = $region59
              $region56: #{rnn_sequence_forward.1} parent=51 // loop_body
                %v310 = vld [vmem:[%s308] sm:%s301]
                %311 = vst [vmem:[%s309] sm:%s301] %v310
                %v312 = vld [vmem:[%s308 + $0x10] sm:%s301]
                %313 = vst [vmem:[%s309 + $0x8] sm:%s301] %v312
                %v314 = vld [vmem:[%s308 + $0x20] sm:%s301]
                %315 = vst [vmem:[%s309 + $0x10] sm:%s301] %v314
                %v316 = vld [vmem:[%s308 + $0x30] sm:%s301]
                %317 = vst [vmem:[%s309 + $0x18] sm:%s301] %v316
                %v318 = vld [vmem:[%s308 + $0x40] sm:%s301]
                %319 = vst [vmem:[%s309 + $0x20] sm:%s301] %v318
                %v320 = vld [vmem:[%s308 + $0x50] sm:%s301]
                %321 = vst [vmem:[%s309 + $0x28] sm:%s301] %v320
                %v322 = vld [vmem:[%s308 + $0x60] sm:%s301]
                %323 = vst [vmem:[%s309 + $0x30] sm:%s301] %v322
                %v324 = vld [vmem:[%s308 + $0x70] sm:%s301]
                %325 = vst [vmem:[%s309 + $0x38] sm:%s301] %v324
              $region57: #{rnn_sequence_forward.1} parent=51 // loop_footer
                %s307 = sadd.s32 1, %s303
              $region58: #{rnn_sequence_forward.1} parent=51 // loop_footer_branch
                %302 = sbr.rel target = $region54
              $region59: #{rnn_sequence_forward.1} parent=51 // loop_exit
                _
            $region52: #{rnn_sequence_forward.1} parent=43 // pred_fallthru
              _
          $region44: #{rnn_sequence_forward.1} parent=39 // pred_fallthru
            _
          %354 = vnop
        $region40: #{rnn_sequence_forward.1} parent=35 // pred_fallthru
          _
        // Predicated region
        $region75: #{rnn_sequence_forward.1} parent=35 // pred_check
          %p355 = pneg %p81
        $region76: #{rnn_sequence_forward.1} parent=35 // pred_check_branch
          %357 = sbr.rel (%p355) target = $region78
        $region77: #{rnn_sequence_forward.1} parent=35 // pred_region
          %p358 = scmp.lt.s32.totalorder %s28, 1
          %s359 = scalar_select %p358, %s28, 1
          %s360 = smul.addr %s359, 8
          %s361 = scalar_lea.vmem %s1, %s360
        $region78: #{rnn_sequence_forward.1} parent=35 // pred_fallthru
          _
      $region36: #{rnn_sequence_forward.1} parent=5 // pred_fallthru
        _
      %p362 = scmp.le.s32.totalorder 1, %s21
      %p363 = scmp.lt.s32.totalorder %s21, 3
      %p364 = pnand %p362, %p363
      %p365 = pneg %p364
      // Predicated region
      $region79: #{rnn_sequence_forward.1} parent=5 // pred_check
        _
      $region80: #{rnn_sequence_forward.1} parent=5 // pred_check_branch
        %367 = sbr.rel (%p364) target = $region82
      $region81: #{rnn_sequence_forward.1} parent=5 // pred_region
        %s368 = ssub.s32 %s21, 1
        %s369 = sand.u32 %s48, 1
        %s370 = sand.u32 %s48, 1
        %s371 = smul.addr %s370, 64
        %s372 = scalar_lea.vmem [#allocation3], %s371
        // Predicated region
        $region83: #{rnn_sequence_forward.1} parent=81 // pred_check
          %p373 = pneg %p61
        $region84: #{rnn_sequence_forward.1} parent=81 // pred_check_branch
          %375 = sbr.rel (%p373) target = $region86
        $region85: #{rnn_sequence_forward.1} parent=81 // pred_region
          _
        $region86: #{rnn_sequence_forward.1} parent=81 // pred_fallthru
          _
        %s376 = sand.u32 %s48, 1
        %s377 = sand.u32 %s48, 1
        %s378 = smul.addr %s377, 64
        %s379 = scalar_lea.vmem [#allocation3], %s378
        %p380 = pneg %p61
        %p381 = pneg %p58
        %p382 = scmp.lt.s32.totalorder %s30, 1
        %s383 = scalar_select %p382, %s30, 1
        %s384 = smul.addr %s383, 8
        %s385 = scalar_lea.vmem %s1, %s384
        %p386 = pneg %p87
        %p387 = pneg %p84
        %p388 = pneg %p108
        %p389 = pneg %p105
        %p390 = pneg %p129
        %p391 = pneg %p126
        %p392 = pneg %p150
        %p393 = pneg %p147
        %p394 = pneg %p171
        %p395 = pneg %p168
        %p396 = pneg %p192
        %p397 = pneg %p189
        %p398 = pneg %p220
        %p399 = pneg %p217
        %s400 = sand.u32 %s207, 1
        %s401 = scalar_lea.sflag [#allocation5], %s400
        %s402 = sand.u32 %s207, 1
        %s403 = smul.addr %s402, 64
        %s404 = scalar_lea.vmem [#allocation4], %s403
        %p405 = pneg %p248
        %p406 = pneg %p245
        %s407 = sand.u32 %s235, 1
        %s408 = scalar_lea.sflag [#allocation7], %s407
        %s409 = sand.u32 %s235, 1
        %s410 = smul.addr %s409, 64
        %s411 = scalar_lea.vmem [#allocation6], %s410
        %s412 = smul.u32 8, %s31
        %p413 = scmp.lt.s32.totalorder %s30, 1
        %s414 = scalar_select %p413, %s30, 1
        %s415 = smul.addr %s414, 8
        %s416 = scalar_lea.vmem %s1, %s415
        %s417 = smul.u32 8, %s31
        %s418 = smul.u32 8, %s31
        %p419 = scmp.eq.s32.totalorder %s31, 0
        // Predicated region
        $region87: #{rnn_sequence_forward.1} parent=81 // pred_check
          %p420 = pneg %p419
        $region88: #{rnn_sequence_forward.1} parent=81 // pred_check_branch
          %422 = sbr.rel (%p420) target = $region90
        $region89: #{rnn_sequence_forward.1} parent=81 // pred_region
          %v423 = vld [vmem:[%s416] sm:$0xff]
          %vm424 = vcmask 261120
          %425 = vst.msk [vmem:[#allocation2] sm:$0xff] %vm424, %v423
        $region90: #{rnn_sequence_forward.1} parent=81 // pred_fallthru
          _
        %v426 = vld [vmem:[%s2] sm:$0xff]
        %v427 = vld [vmem:[%s2 + $0x8] sm:$0xff]
        %v428 = vld [vmem:[%s3] sm:$0xff]
        %v429 = vld [vmem:[%s3 + $0x8] sm:$0xff]
        %v430 = vld [vmem:[%s3 + $0x10] sm:$0xff]
        %v431 = vld [vmem:[%s3 + $0x18] sm:$0xff]
        %v432 = vld [vmem:[%s4] sm:$0x1]
        %v433 = vld [vmem:[%s5] sm:$0xff]
        %v434 = vld [vmem:[%s5 + $0x8] sm:$0xff]
        %v435 = vld [vmem:[%s5 + $0x10] sm:$0xff]
        %v436 = vld [vmem:[%s5 + $0x18] sm:$0xff]
        %v437 = vld [vmem:[%s5 + $0x20] sm:$0xff]
        %v438 = vld [vmem:[%s5 + $0x28] sm:$0xff]
        %v439 = vld [vmem:[%s6] sm:$0x1]
        %v440 = vld [vmem:[#allocation2] sm:$0xff]
        %v441 = vld [vmem:[%s372] sm:$0xff]
        %vm442 = vcmask 261120
        %v444 = vsel %vm442, %v440, 0
        %446 = vmatpush.msra.mxu0 0.0
        %447 = vmatpush.msra.mxu0 0.0
        %448 = vmatpush.msra.mxu0 0.0
        %449 = vmatpush.msra.mxu0 0.0
        %450 = vmatpush.msra.mxu0 0.0
        %451 = vmatpush.msra.mxu0 0.0
        %452 = vmatpush.msra.mxu0 0.0
        %453 = vmatpush.msra.mxu0 0.0
        %454 = vmatpush.msra.mxu0 0.0
        %455 = vmatpush.msra.mxu0 0.0
        %456 = vmatpush.msra.mxu0 0.0
        %457 = vmatpush.msra.mxu0 0.0
        %458 = vmatpush.msra.mxu0 %v431
        %459 = vmatpush.msra.mxu0 %v430
        %460 = vmatpush.msra.mxu0 %v429
        %461 = vmatpush.msra.mxu0 %v428
        %462 = vmatmul.f32.gmra.mxu0 %v444
        %v463 = vpop.f32.mrf.mxu0
        %v464 = vadd.f32 0.0, %v463
        %465 = vdwg.mxu0
        %vm466 = vcmask 130048
        %v468 = vsel %vm466, %v441, 0
        %470 = vmatpush.msra.mxu0 0.0
        %471 = vmatpush.msra.mxu0 0.0
        %472 = vmatpush.msra.mxu0 0.0
        %473 = vmatpush.msra.mxu0 0.0
        %474 = vmatpush.msra.mxu0 0.0
        %475 = vmatpush.msra.mxu0 0.0
        %476 = vmatpush.msra.mxu0 0.0
        %477 = vmatpush.msra.mxu0 0.0
        %478 = vmatpush.msra.mxu0 0.0
        %479 = vmatpush.msra.mxu0 0.0
        %480 = vmatpush.msra.mxu0 0.0
        %481 = vmatpush.msra.mxu0 0.0
        %482 = vmatpush.msra.mxu0 0.0
        %483 = vmatpush.msra.mxu0 0.0
        %484 = vmatpush.msra.mxu0 %v427
        %485 = vmatpush.msra.mxu0 %v426
        %486 = vmatmul.f32.gmra.mxu0 %v468
        %v487 = vpop.f32.mrf.mxu0
        %v488 = vadd.f32 %v464, %v487
        %489 = vdwg.mxu0
        %v491 = vperm.slane %v432, 0
        %v493 = vadd.f32 %v488, %v491
        %v495 = vperm.slane %v439, 0
        %vm497 = vcmask 392192
        %v499 = vsel %vm497, %v493, 0
        %501 = vmatpush.msra.mxu0 0.0
        %502 = vmatpush.msra.mxu0 0.0
        %503 = vmatpush.msra.mxu0 0.0
        %504 = vmatpush.msra.mxu0 0.0
        %505 = vmatpush.msra.mxu0 0.0
        %506 = vmatpush.msra.mxu0 0.0
        %507 = vmatpush.msra.mxu0 0.0
        %508 = vmatpush.msra.mxu0 0.0
        %509 = vmatpush.msra.mxu0 0.0
        %510 = vmatpush.msra.mxu0 0.0
        %511 = vmatpush.msra.mxu0 %v438
        %512 = vmatpush.msra.mxu0 %v437
        %513 = vmatpush.msra.mxu0 %v436
        %514 = vmatpush.msra.mxu0 %v435
        %515 = vmatpush.msra.mxu0 %v434
        %516 = vmatpush.msra.mxu0 %v433
        %517 = vmatmul.f32.gmra.mxu0 %v499
        %v518 = vpop.f32.mrf.mxu0
        %v519 = vadd.f32 %v495, %v518
        %520 = vdwg.mxu0
        %v521 = vsel %vm466, %v519, -inf
        %522 = vmax.xlane.f32.xlu0 %v521
        %v523 = vpop.xlane.xlu0 %522
        %v524 = vsub.f32 %v519, %v523
        %v525 = vmul.f32 %v524, 1.442695
        %v526 = vpow.pop %v525
        %v527 = vsel %vm466, %v526, 0.0
        %528 = vadd.xlane.f32.xlu0 %v527
        %v529 = vpop.xlane.xlu0 %528
        %v530 = vlog2.pop %v529
        %v531 = vmul.f32 %v530, 0.6931472
        %v532 = vsub.f32 %v524, %v531
        %533 = vst.msk [vmem:[%s404] sm:$0xff] %vm466, %v532
        %534 = vst.msk [vmem:[%s411] sm:$0xff] %vm442, %v493
        %s535 = scalar_lea.vmem %s372, 8 [#allocation3]
        %v536 = vld [vmem:[%s535] sm:$0xff]
        %v537 = vsel %vm442, %v493, 0
        %539 = vmatpush.msra.mxu0 0.0
        %540 = vmatpush.msra.mxu0 0.0
        %541 = vmatpush.msra.mxu0 0.0
        %542 = vmatpush.msra.mxu0 0.0
        %543 = vmatpush.msra.mxu0 0.0
        %544 = vmatpush.msra.mxu0 0.0
        %545 = vmatpush.msra.mxu0 0.0
        %546 = vmatpush.msra.mxu0 0.0
        %547 = vmatpush.msra.mxu0 0.0
        %548 = vmatpush.msra.mxu0 0.0
        %549 = vmatpush.msra.mxu0 0.0
        %550 = vmatpush.msra.mxu0 0.0
        %551 = vmatpush.msra.mxu0 %v431
        %552 = vmatpush.msra.mxu0 %v430
        %553 = vmatpush.msra.mxu0 %v429
        %554 = vmatpush.msra.mxu0 %v428
        %555 = vmatmul.f32.gmra.mxu0 %v537
        %v556 = vpop.f32.mrf.mxu0
        %v557 = vadd.f32 0.0, %v556
        %558 = vdwg.mxu0
        %v560 = vsel %vm466, %v536, 0
        %562 = vmatpush.msra.mxu0 0.0
        %563 = vmatpush.msra.mxu0 0.0
        %564 = vmatpush.msra.mxu0 0.0
        %565 = vmatpush.msra.mxu0 0.0
        %566 = vmatpush.msra.mxu0 0.0
        %567 = vmatpush.msra.mxu0 0.0
        %568 = vmatpush.msra.mxu0 0.0
        %569 = vmatpush.msra.mxu0 0.0
        %570 = vmatpush.msra.mxu0 0.0
        %571 = vmatpush.msra.mxu0 0.0
        %572 = vmatpush.msra.mxu0 0.0
        %573 = vmatpush.msra.mxu0 0.0
        %574 = vmatpush.msra.mxu0 0.0
        %575 = vmatpush.msra.mxu0 0.0
        %576 = vmatpush.msra.mxu0 %v427
        %577 = vmatpush.msra.mxu0 %v426
        %578 = vmatmul.f32.gmra.mxu0 %v560
        %v579 = vpop.f32.mrf.mxu0
        %v580 = vadd.f32 %v557, %v579
        %581 = vdwg.mxu0
        %v582 = vadd.f32 %v580, %v491
        %v584 = vsel %vm497, %v582, 0
        %586 = vmatpush.msra.mxu0 0.0
        %587 = vmatpush.msra.mxu0 0.0
        %588 = vmatpush.msra.mxu0 0.0
        %589 = vmatpush.msra.mxu0 0.0
        %590 = vmatpush.msra.mxu0 0.0
        %591 = vmatpush.msra.mxu0 0.0
        %592 = vmatpush.msra.mxu0 0.0
        %593 = vmatpush.msra.mxu0 0.0
        %594 = vmatpush.msra.mxu0 0.0
        %595 = vmatpush.msra.mxu0 0.0
        %596 = vmatpush.msra.mxu0 %v438
        %597 = vmatpush.msra.mxu0 %v437
        %598 = vmatpush.msra.mxu0 %v436
        %599 = vmatpush.msra.mxu0 %v435
        %600 = vmatpush.msra.mxu0 %v434
        %601 = vmatpush.msra.mxu0 %v433
        %602 = vmatmul.f32.gmra.mxu0 %v584
        %v603 = vpop.f32.mrf.mxu0
        %v604 = vadd.f32 %v495, %v603
        %605 = vdwg.mxu0
        %v606 = vsel %vm466, %v604, -inf
        %607 = vmax.xlane.f32.xlu0 %v606
        %v608 = vpop.xlane.xlu0 %607
        %v609 = vsub.f32 %v604, %v608
        %v610 = vmul.f32 %v609, 1.442695
        %v611 = vpow.pop %v610
        %v612 = vsel %vm466, %v611, 0.0
        %613 = vadd.xlane.f32.xlu0 %v612
        %v614 = vpop.xlane.xlu0 %613
        %v615 = vlog2.pop %v614
        %v616 = vmul.f32 %v615, 0.6931472
        %v617 = vsub.f32 %v609, %v616
        %s618 = scalar_lea.vmem %s404, 8 [#allocation4]
        %619 = vst.msk [vmem:[%s618] sm:$0xff] %vm466, %v617
        %s620 = scalar_lea.vmem %s411, 8 [#allocation6]
        %621 = vst.msk [vmem:[%s620] sm:$0xff] %vm442, %v582
        %s622 = scalar_lea.vmem %s372, 16 [#allocation3]
        %v623 = vld [vmem:[%s622] sm:$0xff]
        %v624 = vsel %vm442, %v582, 0
        %626 = vmatpush.msra.mxu0 0.0
        %627 = vmatpush.msra.mxu0 0.0
        %628 = vmatpush.msra.mxu0 0.0
        %629 = vmatpush.msra.mxu0 0.0
        %630 = vmatpush.msra.mxu0 0.0
        %631 = vmatpush.msra.mxu0 0.0
        %632 = vmatpush.msra.mxu0 0.0
        %633 = vmatpush.msra.mxu0 0.0
        %634 = vmatpush.msra.mxu0 0.0
        %635 = vmatpush.msra.mxu0 0.0
        %636 = vmatpush.msra.mxu0 0.0
        %637 = vmatpush.msra.mxu0 0.0
        %638 = vmatpush.msra.mxu0 %v431
        %639 = vmatpush.msra.mxu0 %v430
        %640 = vmatpush.msra.mxu0 %v429
        %641 = vmatpush.msra.mxu0 %v428
        %642 = vmatmul.f32.gmra.mxu0 %v624
        %v643 = vpop.f32.mrf.mxu0
        %v644 = vadd.f32 0.0, %v643
        %645 = vdwg.mxu0
        %v647 = vsel %vm466, %v623, 0
        %649 = vmatpush.msra.mxu0 0.0
        %650 = vmatpush.msra.mxu0 0.0
        %651 = vmatpush.msra.mxu0 0.0
        %652 = vmatpush.msra.mxu0 0.0
        %653 = vmatpush.msra.mxu0 0.0
        %654 = vmatpush.msra.mxu0 0.0
        %655 = vmatpush.msra.mxu0 0.0
        %656 = vmatpush.msra.mxu0 0.0
        %657 = vmatpush.msra.mxu0 0.0
        %658 = vmatpush.msra.mxu0 0.0
        %659 = vmatpush.msra.mxu0 0.0
        %660 = vmatpush.msra.mxu0 0.0
        %661 = vmatpush.msra.mxu0 0.0
        %662 = vmatpush.msra.mxu0 0.0
        %663 = vmatpush.msra.mxu0 %v427
        %664 = vmatpush.msra.mxu0 %v426
        %665 = vmatmul.f32.gmra.mxu0 %v647
        %v666 = vpop.f32.mrf.mxu0
        %v667 = vadd.f32 %v644, %v666
        %668 = vdwg.mxu0
        %v669 = vadd.f32 %v667, %v491
        %v671 = vsel %vm497, %v669, 0
        %673 = vmatpush.msra.mxu0 0.0
        %674 = vmatpush.msra.mxu0 0.0
        %675 = vmatpush.msra.mxu0 0.0
        %676 = vmatpush.msra.mxu0 0.0
        %677 = vmatpush.msra.mxu0 0.0
        %678 = vmatpush.msra.mxu0 0.0
        %679 = vmatpush.msra.mxu0 0.0
        %680 = vmatpush.msra.mxu0 0.0
        %681 = vmatpush.msra.mxu0 0.0
        %682 = vmatpush.msra.mxu0 0.0
        %683 = vmatpush.msra.mxu0 %v438
        %684 = vmatpush.msra.mxu0 %v437
        %685 = vmatpush.msra.mxu0 %v436
        %686 = vmatpush.msra.mxu0 %v435
        %687 = vmatpush.msra.mxu0 %v434
        %688 = vmatpush.msra.mxu0 %v433
        %689 = vmatmul.f32.gmra.mxu0 %v671
        %v690 = vpop.f32.mrf.mxu0
        %v691 = vadd.f32 %v495, %v690
        %692 = vdwg.mxu0
        %v693 = vsel %vm466, %v691, -inf
        %694 = vmax.xlane.f32.xlu0 %v693
        %v695 = vpop.xlane.xlu0 %694
        %v696 = vsub.f32 %v691, %v695
        %v697 = vmul.f32 %v696, 1.442695
        %v698 = vpow.pop %v697
        %v699 = vsel %vm466, %v698, 0.0
        %700 = vadd.xlane.f32.xlu0 %v699
        %v701 = vpop.xlane.xlu0 %700
        %v702 = vlog2.pop %v701
        %v703 = vmul.f32 %v702, 0.6931472
        %v704 = vsub.f32 %v696, %v703
        %s705 = scalar_lea.vmem %s404, 16 [#allocation4]
        %706 = vst.msk [vmem:[%s705] sm:$0xff] %vm466, %v704
        %s707 = scalar_lea.vmem %s411, 16 [#allocation6]
        %708 = vst.msk [vmem:[%s707] sm:$0xff] %vm442, %v669
        %s709 = scalar_lea.vmem %s372, 24 [#allocation3]
        %v710 = vld [vmem:[%s709] sm:$0xff]
        %v711 = vsel %vm442, %v669, 0
        %713 = vmatpush.msra.mxu0 0.0
        %714 = vmatpush.msra.mxu0 0.0
        %715 = vmatpush.msra.mxu0 0.0
        %716 = vmatpush.msra.mxu0 0.0
        %717 = vmatpush.msra.mxu0 0.0
        %718 = vmatpush.msra.mxu0 0.0
        %719 = vmatpush.msra.mxu0 0.0
        %720 = vmatpush.msra.mxu0 0.0
        %721 = vmatpush.msra.mxu0 0.0
        %722 = vmatpush.msra.mxu0 0.0
        %723 = vmatpush.msra.mxu0 0.0
        %724 = vmatpush.msra.mxu0 0.0
        %725 = vmatpush.msra.mxu0 %v431
        %726 = vmatpush.msra.mxu0 %v430
        %727 = vmatpush.msra.mxu0 %v429
        %728 = vmatpush.msra.mxu0 %v428
        %729 = vmatmul.f32.gmra.mxu0 %v711
        %v730 = vpop.f32.mrf.mxu0
        %v731 = vadd.f32 0.0, %v730
        %732 = vdwg.mxu0
        %v734 = vsel %vm466, %v710, 0
        %736 = vmatpush.msra.mxu0 0.0
        %737 = vmatpush.msra.mxu0 0.0
        %738 = vmatpush.msra.mxu0 0.0
        %739 = vmatpush.msra.mxu0 0.0
        %740 = vmatpush.msra.mxu0 0.0
        %741 = vmatpush.msra.mxu0 0.0
        %742 = vmatpush.msra.mxu0 0.0
        %743 = vmatpush.msra.mxu0 0.0
        %744 = vmatpush.msra.mxu0 0.0
        %745 = vmatpush.msra.mxu0 0.0
        %746 = vmatpush.msra.mxu0 0.0
        %747 = vmatpush.msra.mxu0 0.0
        %748 = vmatpush.msra.mxu0 0.0
        %749 = vmatpush.msra.mxu0 0.0
        %750 = vmatpush.msra.mxu0 %v427
        %751 = vmatpush.msra.mxu0 %v426
        %752 = vmatmul.f32.gmra.mxu0 %v734
        %v753 = vpop.f32.mrf.mxu0
        %v754 = vadd.f32 %v731, %v753
        %755 = vdwg.mxu0
        %v756 = vadd.f32 %v754, %v491
        %v758 = vsel %vm497, %v756, 0
        %760 = vmatpush.msra.mxu0 0.0
        %761 = vmatpush.msra.mxu0 0.0
        %762 = vmatpush.msra.mxu0 0.0
        %763 = vmatpush.msra.mxu0 0.0
        %764 = vmatpush.msra.mxu0 0.0
        %765 = vmatpush.msra.mxu0 0.0
        %766 = vmatpush.msra.mxu0 0.0
        %767 = vmatpush.msra.mxu0 0.0
        %768 = vmatpush.msra.mxu0 0.0
        %769 = vmatpush.msra.mxu0 0.0
        %770 = vmatpush.msra.mxu0 %v438
        %771 = vmatpush.msra.mxu0 %v437
        %772 = vmatpush.msra.mxu0 %v436
        %773 = vmatpush.msra.mxu0 %v435
        %774 = vmatpush.msra.mxu0 %v434
        %775 = vmatpush.msra.mxu0 %v433
        %776 = vmatmul.f32.gmra.mxu0 %v758
        %v777 = vpop.f32.mrf.mxu0
        %v778 = vadd.f32 %v495, %v777
        %779 = vdwg.mxu0
        %v780 = vsel %vm466, %v778, -inf
        %781 = vmax.xlane.f32.xlu0 %v780
        %v782 = vpop.xlane.xlu0 %781
        %v783 = vsub.f32 %v778, %v782
        %v784 = vmul.f32 %v783, 1.442695
        %v785 = vpow.pop %v784
        %v786 = vsel %vm466, %v785, 0.0
        %787 = vadd.xlane.f32.xlu0 %v786
        %v788 = vpop.xlane.xlu0 %787
        %v789 = vlog2.pop %v788
        %v790 = vmul.f32 %v789, 0.6931472
        %v791 = vsub.f32 %v783, %v790
        %s792 = scalar_lea.vmem %s404, 24 [#allocation4]
        %793 = vst.msk [vmem:[%s792] sm:$0xff] %vm466, %v791
        %s794 = scalar_lea.vmem %s411, 24 [#allocation6]
        %795 = vst.msk [vmem:[%s794] sm:$0xff] %vm442, %v756
        %s796 = scalar_lea.vmem %s372, 32 [#allocation3]
        %v797 = vld [vmem:[%s796] sm:$0xff]
        %v798 = vsel %vm442, %v756, 0
        %800 = vmatpush.msra.mxu0 0.0
        %801 = vmatpush.msra.mxu0 0.0
        %802 = vmatpush.msra.mxu0 0.0
        %803 = vmatpush.msra.mxu0 0.0
        %804 = vmatpush.msra.mxu0 0.0
        %805 = vmatpush.msra.mxu0 0.0
        %806 = vmatpush.msra.mxu0 0.0
        %807 = vmatpush.msra.mxu0 0.0
        %808 = vmatpush.msra.mxu0 0.0
        %809 = vmatpush.msra.mxu0 0.0
        %810 = vmatpush.msra.mxu0 0.0
        %811 = vmatpush.msra.mxu0 0.0
        %812 = vmatpush.msra.mxu0 %v431
        %813 = vmatpush.msra.mxu0 %v430
        %814 = vmatpush.msra.mxu0 %v429
        %815 = vmatpush.msra.mxu0 %v428
        %816 = vmatmul.f32.gmra.mxu0 %v798
        %v817 = vpop.f32.mrf.mxu0
        %v818 = vadd.f32 0.0, %v817
        %819 = vdwg.mxu0
        %v821 = vsel %vm466, %v797, 0
        %823 = vmatpush.msra.mxu0 0.0
        %824 = vmatpush.msra.mxu0 0.0
        %825 = vmatpush.msra.mxu0 0.0
        %826 = vmatpush.msra.mxu0 0.0
        %827 = vmatpush.msra.mxu0 0.0
        %828 = vmatpush.msra.mxu0 0.0
        %829 = vmatpush.msra.mxu0 0.0
        %830 = vmatpush.msra.mxu0 0.0
        %831 = vmatpush.msra.mxu0 0.0
        %832 = vmatpush.msra.mxu0 0.0
        %833 = vmatpush.msra.mxu0 0.0
        %834 = vmatpush.msra.mxu0 0.0
        %835 = vmatpush.msra.mxu0 0.0
        %836 = vmatpush.msra.mxu0 0.0
        %837 = vmatpush.msra.mxu0 %v427
        %838 = vmatpush.msra.mxu0 %v426
        %839 = vmatmul.f32.gmra.mxu0 %v821
        %v840 = vpop.f32.mrf.mxu0
        %v841 = vadd.f32 %v818, %v840
        %842 = vdwg.mxu0
        %v843 = vadd.f32 %v841, %v491
        %v845 = vsel %vm497, %v843, 0
        %847 = vmatpush.msra.mxu0 0.0
        %848 = vmatpush.msra.mxu0 0.0
        %849 = vmatpush.msra.mxu0 0.0
        %850 = vmatpush.msra.mxu0 0.0
        %851 = vmatpush.msra.mxu0 0.0
        %852 = vmatpush.msra.mxu0 0.0
        %853 = vmatpush.msra.mxu0 0.0
        %854 = vmatpush.msra.mxu0 0.0
        %855 = vmatpush.msra.mxu0 0.0
        %856 = vmatpush.msra.mxu0 0.0
        %857 = vmatpush.msra.mxu0 %v438
        %858 = vmatpush.msra.mxu0 %v437
        %859 = vmatpush.msra.mxu0 %v436
        %860 = vmatpush.msra.mxu0 %v435
        %861 = vmatpush.msra.mxu0 %v434
        %862 = vmatpush.msra.mxu0 %v433
        %863 = vmatmul.f32.gmra.mxu0 %v845
        %v864 = vpop.f32.mrf.mxu0
        %v865 = vadd.f32 %v495, %v864
        %866 = vdwg.mxu0
        %v867 = vsel %vm466, %v865, -inf
        %868 = vmax.xlane.f32.xlu0 %v867
        %v869 = vpop.xlane.xlu0 %868
        %v870 = vsub.f32 %v865, %v869
        %v871 = vmul.f32 %v870, 1.442695
        %v872 = vpow.pop %v871
        %v873 = vsel %vm466, %v872, 0.0
        %874 = vadd.xlane.f32.xlu0 %v873
        %v875 = vpop.xlane.xlu0 %874
        %v876 = vlog2.pop %v875
        %v877 = vmul.f32 %v876, 0.6931472
        %v878 = vsub.f32 %v870, %v877
        %s879 = scalar_lea.vmem %s404, 32 [#allocation4]
        %880 = vst.msk [vmem:[%s879] sm:$0xff] %vm466, %v878
        %s881 = scalar_lea.vmem %s411, 32 [#allocation6]
        %882 = vst.msk [vmem:[%s881] sm:$0xff] %vm442, %v843
        %s883 = scalar_lea.vmem %s372, 40 [#allocation3]
        %v884 = vld [vmem:[%s883] sm:$0xff]
        %v885 = vsel %vm442, %v843, 0
        %887 = vmatpush.msra.mxu0 0.0
        %888 = vmatpush.msra.mxu0 0.0
        %889 = vmatpush.msra.mxu0 0.0
        %890 = vmatpush.msra.mxu0 0.0
        %891 = vmatpush.msra.mxu0 0.0
        %892 = vmatpush.msra.mxu0 0.0
        %893 = vmatpush.msra.mxu0 0.0
        %894 = vmatpush.msra.mxu0 0.0
        %895 = vmatpush.msra.mxu0 0.0
        %896 = vmatpush.msra.mxu0 0.0
        %897 = vmatpush.msra.mxu0 0.0
        %898 = vmatpush.msra.mxu0 0.0
        %899 = vmatpush.msra.mxu0 %v431
        %900 = vmatpush.msra.mxu0 %v430
        %901 = vmatpush.msra.mxu0 %v429
        %902 = vmatpush.msra.mxu0 %v428
        %903 = vmatmul.f32.gmra.mxu0 %v885
        %v904 = vpop.f32.mrf.mxu0
        %v905 = vadd.f32 0.0, %v904
        %906 = vdwg.mxu0
        %v908 = vsel %vm466, %v884, 0
        %910 = vmatpush.msra.mxu0 0.0
        %911 = vmatpush.msra.mxu0 0.0
        %912 = vmatpush.msra.mxu0 0.0
        %913 = vmatpush.msra.mxu0 0.0
        %914 = vmatpush.msra.mxu0 0.0
        %915 = vmatpush.msra.mxu0 0.0
        %916 = vmatpush.msra.mxu0 0.0
        %917 = vmatpush.msra.mxu0 0.0
        %918 = vmatpush.msra.mxu0 0.0
        %919 = vmatpush.msra.mxu0 0.0
        %920 = vmatpush.msra.mxu0 0.0
        %921 = vmatpush.msra.mxu0 0.0
        %922 = vmatpush.msra.mxu0 0.0
        %923 = vmatpush.msra.mxu0 0.0
        %924 = vmatpush.msra.mxu0 %v427
        %925 = vmatpush.msra.mxu0 %v426
        %926 = vmatmul.f32.gmra.mxu0 %v908
        %v927 = vpop.f32.mrf.mxu0
        %v928 = vadd.f32 %v905, %v927
        %929 = vdwg.mxu0
        %v930 = vadd.f32 %v928, %v491
        %v932 = vsel %vm497, %v930, 0
        %934 = vmatpush.msra.mxu0 0.0
        %935 = vmatpush.msra.mxu0 0.0
        %936 = vmatpush.msra.mxu0 0.0
        %937 = vmatpush.msra.mxu0 0.0
        %938 = vmatpush.msra.mxu0 0.0
        %939 = vmatpush.msra.mxu0 0.0
        %940 = vmatpush.msra.mxu0 0.0
        %941 = vmatpush.msra.mxu0 0.0
        %942 = vmatpush.msra.mxu0 0.0
        %943 = vmatpush.msra.mxu0 0.0
        %944 = vmatpush.msra.mxu0 %v438
        %945 = vmatpush.msra.mxu0 %v437
        %946 = vmatpush.msra.mxu0 %v436
        %947 = vmatpush.msra.mxu0 %v435
        %948 = vmatpush.msra.mxu0 %v434
        %949 = vmatpush.msra.mxu0 %v433
        %950 = vmatmul.f32.gmra.mxu0 %v932
        %v951 = vpop.f32.mrf.mxu0
        %v952 = vadd.f32 %v495, %v951
        %953 = vdwg.mxu0
        %v954 = vsel %vm466, %v952, -inf
        %955 = vmax.xlane.f32.xlu0 %v954
        %v956 = vpop.xlane.xlu0 %955
        %v957 = vsub.f32 %v952, %v956
        %v958 = vmul.f32 %v957, 1.442695
        %v959 = vpow.pop %v958
        %v960 = vsel %vm466, %v959, 0.0
        %961 = vadd.xlane.f32.xlu0 %v960
        %v962 = vpop.xlane.xlu0 %961
        %v963 = vlog2.pop %v962
        %v964 = vmul.f32 %v963, 0.6931472
        %v965 = vsub.f32 %v957, %v964
        %s966 = scalar_lea.vmem %s404, 40 [#allocation4]
        %967 = vst.msk [vmem:[%s966] sm:$0xff] %vm466, %v965
        %s968 = scalar_lea.vmem %s411, 40 [#allocation6]
        %969 = vst.msk [vmem:[%s968] sm:$0xff] %vm442, %v930
        %s970 = scalar_lea.vmem %s372, 48 [#allocation3]
        %v971 = vld [vmem:[%s970] sm:$0xff]
        %v972 = vsel %vm442, %v930, 0
        %974 = vmatpush.msra.mxu0 0.0
        %975 = vmatpush.msra.mxu0 0.0
        %976 = vmatpush.msra.mxu0 0.0
        %977 = vmatpush.msra.mxu0 0.0
        %978 = vmatpush.msra.mxu0 0.0
        %979 = vmatpush.msra.mxu0 0.0
        %980 = vmatpush.msra.mxu0 0.0
        %981 = vmatpush.msra.mxu0 0.0
        %982 = vmatpush.msra.mxu0 0.0
        %983 = vmatpush.msra.mxu0 0.0
        %984 = vmatpush.msra.mxu0 0.0
        %985 = vmatpush.msra.mxu0 0.0
        %986 = vmatpush.msra.mxu0 %v431
        %987 = vmatpush.msra.mxu0 %v430
        %988 = vmatpush.msra.mxu0 %v429
        %989 = vmatpush.msra.mxu0 %v428
        %990 = vmatmul.f32.gmra.mxu0 %v972
        %v991 = vpop.f32.mrf.mxu0
        %v992 = vadd.f32 0.0, %v991
        %993 = vdwg.mxu0
        %v995 = vsel %vm466, %v971, 0
        %997 = vmatpush.msra.mxu0 0.0
        %998 = vmatpush.msra.mxu0 0.0
        %999 = vmatpush.msra.mxu0 0.0
        %1000 = vmatpush.msra.mxu0 0.0
        %1001 = vmatpush.msra.mxu0 0.0
        %1002 = vmatpush.msra.mxu0 0.0
        %1003 = vmatpush.msra.mxu0 0.0
        %1004 = vmatpush.msra.mxu0 0.0
        %1005 = vmatpush.msra.mxu0 0.0
        %1006 = vmatpush.msra.mxu0 0.0
        %1007 = vmatpush.msra.mxu0 0.0
        %1008 = vmatpush.msra.mxu0 0.0
        %1009 = vmatpush.msra.mxu0 0.0
        %1010 = vmatpush.msra.mxu0 0.0
        %1011 = vmatpush.msra.mxu0 %v427
        %1012 = vmatpush.msra.mxu0 %v426
        %1013 = vmatmul.f32.gmra.mxu0 %v995
        %v1014 = vpop.f32.mrf.mxu0
        %v1015 = vadd.f32 %v992, %v1014
        %1016 = vdwg.mxu0
        %v1017 = vadd.f32 %v1015, %v491
        %v1019 = vsel %vm497, %v1017, 0
        %1021 = vmatpush.msra.mxu0 0.0
        %1022 = vmatpush.msra.mxu0 0.0
        %1023 = vmatpush.msra.mxu0 0.0
        %1024 = vmatpush.msra.mxu0 0.0
        %1025 = vmatpush.msra.mxu0 0.0
        %1026 = vmatpush.msra.mxu0 0.0
        %1027 = vmatpush.msra.mxu0 0.0
        %1028 = vmatpush.msra.mxu0 0.0
        %1029 = vmatpush.msra.mxu0 0.0
        %1030 = vmatpush.msra.mxu0 0.0
        %1031 = vmatpush.msra.mxu0 %v438
        %1032 = vmatpush.msra.mxu0 %v437
        %1033 = vmatpush.msra.mxu0 %v436
        %1034 = vmatpush.msra.mxu0 %v435
        %1035 = vmatpush.msra.mxu0 %v434
        %1036 = vmatpush.msra.mxu0 %v433
        %1037 = vmatmul.f32.gmra.mxu0 %v1019
        %v1038 = vpop.f32.mrf.mxu0
        %v1039 = vadd.f32 %v495, %v1038
        %1040 = vdwg.mxu0
        %v1041 = vsel %vm466, %v1039, -inf
        %1042 = vmax.xlane.f32.xlu0 %v1041
        %v1043 = vpop.xlane.xlu0 %1042
        %v1044 = vsub.f32 %v1039, %v1043
        %v1045 = vmul.f32 %v1044, 1.442695
        %v1046 = vpow.pop %v1045
        %v1047 = vsel %vm466, %v1046, 0.0
        %1048 = vadd.xlane.f32.xlu0 %v1047
        %v1049 = vpop.xlane.xlu0 %1048
        %v1050 = vlog2.pop %v1049
        %v1051 = vmul.f32 %v1050, 0.6931472
        %v1052 = vsub.f32 %v1044, %v1051
        %s1053 = scalar_lea.vmem %s404, 48 [#allocation4]
        %1054 = vst.msk [vmem:[%s1053] sm:$0xff] %vm466, %v1052
        %s1055 = scalar_lea.vmem %s411, 48 [#allocation6]
        %1056 = vst.msk [vmem:[%s1055] sm:$0xff] %vm442, %v1017
        %s1057 = scalar_lea.vmem %s372, 56 [#allocation3]
        %v1058 = vld [vmem:[%s1057] sm:$0xff]
        %v1059 = vsel %vm442, %v1017, 0
        %1061 = vmatpush.msra.mxu0 0.0
        %1062 = vmatpush.msra.mxu0 0.0
        %1063 = vmatpush.msra.mxu0 0.0
        %1064 = vmatpush.msra.mxu0 0.0
        %1065 = vmatpush.msra.mxu0 0.0
        %1066 = vmatpush.msra.mxu0 0.0
        %1067 = vmatpush.msra.mxu0 0.0
        %1068 = vmatpush.msra.mxu0 0.0
        %1069 = vmatpush.msra.mxu0 0.0
        %1070 = vmatpush.msra.mxu0 0.0
        %1071 = vmatpush.msra.mxu0 0.0
        %1072 = vmatpush.msra.mxu0 0.0
        %1073 = vmatpush.msra.mxu0 %v431
        %1074 = vmatpush.msra.mxu0 %v430
        %1075 = vmatpush.msra.mxu0 %v429
        %1076 = vmatpush.msra.mxu0 %v428
        %1077 = vmatmul.f32.gmra.mxu0 %v1059
        %v1078 = vpop.f32.mrf.mxu0
        %v1079 = vadd.f32 0.0, %v1078
        %1080 = vdwg.mxu0
        %v1082 = vsel %vm466, %v1058, 0
        %1084 = vmatpush.msra.mxu0 0.0
        %1085 = vmatpush.msra.mxu0 0.0
        %1086 = vmatpush.msra.mxu0 0.0
        %1087 = vmatpush.msra.mxu0 0.0
        %1088 = vmatpush.msra.mxu0 0.0
        %1089 = vmatpush.msra.mxu0 0.0
        %1090 = vmatpush.msra.mxu0 0.0
        %1091 = vmatpush.msra.mxu0 0.0
        %1092 = vmatpush.msra.mxu0 0.0
        %1093 = vmatpush.msra.mxu0 0.0
        %1094 = vmatpush.msra.mxu0 0.0
        %1095 = vmatpush.msra.mxu0 0.0
        %1096 = vmatpush.msra.mxu0 0.0
        %1097 = vmatpush.msra.mxu0 0.0
        %1098 = vmatpush.msra.mxu0 %v427
        %1099 = vmatpush.msra.mxu0 %v426
        %1100 = vmatmul.f32.gmra.mxu0 %v1082
        %v1101 = vpop.f32.mrf.mxu0
        %v1102 = vadd.f32 %v1079, %v1101
        %1103 = vdwg.mxu0
        %v1104 = vadd.f32 %v1102, %v491
        %v1106 = vsel %vm497, %v1104, 0
        %1108 = vmatpush.msra.mxu0 0.0
        %1109 = vmatpush.msra.mxu0 0.0
        %1110 = vmatpush.msra.mxu0 0.0
        %1111 = vmatpush.msra.mxu0 0.0
        %1112 = vmatpush.msra.mxu0 0.0
        %1113 = vmatpush.msra.mxu0 0.0
        %1114 = vmatpush.msra.mxu0 0.0
        %1115 = vmatpush.msra.mxu0 0.0
        %1116 = vmatpush.msra.mxu0 0.0
        %1117 = vmatpush.msra.mxu0 0.0
        %1118 = vmatpush.msra.mxu0 %v438
        %1119 = vmatpush.msra.mxu0 %v437
        %1120 = vmatpush.msra.mxu0 %v436
        %1121 = vmatpush.msra.mxu0 %v435
        %1122 = vmatpush.msra.mxu0 %v434
        %1123 = vmatpush.msra.mxu0 %v433
        %1124 = vmatmul.f32.gmra.mxu0 %v1106
        %v1125 = vpop.f32.mrf.mxu0
        %v1126 = vadd.f32 %v495, %v1125
        %1127 = vdwg.mxu0
        %v1128 = vsel %vm466, %v1126, -inf
        %1129 = vmax.xlane.f32.xlu0 %v1128
        %v1130 = vpop.xlane.xlu0 %1129
        %v1131 = vsub.f32 %v1126, %v1130
        %v1132 = vmul.f32 %v1131, 1.442695
        %v1133 = vpow.pop %v1132
        %v1134 = vsel %vm466, %v1133, 0.0
        %1135 = vadd.xlane.f32.xlu0 %v1134
        %v1136 = vpop.xlane.xlu0 %1135
        %v1137 = vlog2.pop %v1136
        %v1138 = vmul.f32 %v1137, 0.6931472
        %v1139 = vsub.f32 %v1131, %v1138
        %s1140 = scalar_lea.vmem %s404, 56 [#allocation4]
        %1141 = vst.msk [vmem:[%s1140] sm:$0xff] %vm466, %v1139
        %s1142 = scalar_lea.vmem %s411, 56 [#allocation6]
        %1143 = vst.msk [vmem:[%s1142] sm:$0xff] %vm442, %v1104
        %1144 = vst.msk [vmem:[#allocation2] sm:$0xff] %vm442, %v1104
        %s1145 = sand.u32 %s207, 1
        %s1146 = scalar_lea.sflag [#allocation5], %s1145
        %s1147 = sand.u32 %s207, 1
        %s1148 = smul.addr %s1147, 64
        %s1149 = scalar_lea.vmem [#allocation4], %s1148
        %s1150 = sand.u32 %s235, 1
        %s1151 = scalar_lea.sflag [#allocation7], %s1150
        %s1152 = sand.u32 %s235, 1
        %s1153 = smul.addr %s1152, 64
        %s1154 = scalar_lea.vmem [#allocation6], %s1153
        // Predicated region
        $region91: #{rnn_sequence_forward.1} parent=81 // pred_check
          %p1155 = pneg %p217
        $region92: #{rnn_sequence_forward.1} parent=81 // pred_check_branch
          %1157 = sbr.rel (%p1155) target = $region94
        $region93: #{rnn_sequence_forward.1} parent=81 // pred_region
          %s1158 = smul.u32 8, %s31
          %1160 = vsyncadd %s1146, 0
          %s1161 = smul.addr %s1158, 2
          %s1162 = sadd.s32 %s30, %s1161
          %s1163 = smul.addr %s1162, 8
          %s1164 = scalar_lea.hbm %s7, %s1163
          %s1165 = sshll.u32 %s1149, 4
          %s1166 = int_to_ptr.vmem [resolvable:$true] %s1165
          %s1167 = sshll.u32 %s1164, 4
          %s1168 = int_to_ptr.hbm [resolvable:$true] %s1167
          %1173 = dma.vmem_to_hbm [thread:$0]  %s1166, 1024, %s1168, %s1146, 128, 256, 8
        $region94: #{rnn_sequence_forward.1} parent=81 // pred_fallthru
          _
        // Predicated region
        $region95: #{rnn_sequence_forward.1} parent=81 // pred_check
          %p1174 = pneg %p245
        $region96: #{rnn_sequence_forward.1} parent=81 // pred_check_branch
          %1176 = sbr.rel (%p1174) target = $region98
        $region97: #{rnn_sequence_forward.1} parent=81 // pred_region
          %s1177 = smul.u32 8, %s31
          %1179 = vsyncadd %s1151, 0
          %s1180 = smul.addr %s1177, 2
          %s1181 = sadd.s32 %s30, %s1180
          %s1182 = smul.addr %s1181, 8
          %s1183 = scalar_lea.hbm %s8, %s1182
          %s1184 = sshll.u32 %s1154, 4
          %s1185 = int_to_ptr.vmem [resolvable:$true] %s1184
          %s1186 = sshll.u32 %s1183, 4
          %s1187 = int_to_ptr.hbm [resolvable:$true] %s1186
          %1192 = dma.vmem_to_hbm [thread:$0]  %s1185, 1024, %s1187, %s1151, 128, 256, 8
        $region98: #{rnn_sequence_forward.1} parent=81 // pred_fallthru
          _
      $region82: #{rnn_sequence_forward.1} parent=5 // pred_fallthru
        _
      %p1193 = scmp.le.s32.totalorder 2, %s21
      // Predicated region
      $region99: #{rnn_sequence_forward.1} parent=5 // pred_check
        %p1194 = pneg %p1193
      $region100: #{rnn_sequence_forward.1} parent=5 // pred_check_branch
        %1196 = sbr.rel (%p1194) target = $region102
      $region101: #{rnn_sequence_forward.1} parent=5 // pred_region
        %s1197 = ssub.s32 %s21, 2
        // Predicated region
        $region103: #{rnn_sequence_forward.1} parent=101 // pred_check
          %p1198 = pneg %p223
        $region104: #{rnn_sequence_forward.1} parent=101 // pred_check_branch
          %1200 = sbr.rel (%p1198) target = $region106
        $region105: #{rnn_sequence_forward.1} parent=101 // pred_region
          %s1201 = sand.u32 %s208, 1
          %s1202 = scalar_lea.sflag [#allocation5], %s1201
          %s1203 = sand.u32 %s208, 1
          %s1204 = smul.addr %s1203, 64
          %s1205 = scalar_lea.vmem [#allocation4], %s1204
          %1207 = dma.done %s1202, 1024
        $region106: #{rnn_sequence_forward.1} parent=101 // pred_fallthru
          _
        // Predicated region
        $region107: #{rnn_sequence_forward.1} parent=101 // pred_check
          %p1208 = pneg %p251
        $region108: #{rnn_sequence_forward.1} parent=101 // pred_check_branch
          %1210 = sbr.rel (%p1208) target = $region110
        $region109: #{rnn_sequence_forward.1} parent=101 // pred_region
          %s1211 = sand.u32 %s236, 1
          %s1212 = scalar_lea.sflag [#allocation7], %s1211
          %s1213 = sand.u32 %s236, 1
          %s1214 = smul.addr %s1213, 64
          %s1215 = scalar_lea.vmem [#allocation6], %s1214
          %1217 = dma.done %s1212, 1024
        $region110: #{rnn_sequence_forward.1} parent=101 // pred_fallthru
          _
      $region102: #{rnn_sequence_forward.1} parent=5 // pred_fallthru
        _
    $region6: #{rnn_sequence_forward.1} parent=1 // loop_footer
      %s25 = sadd.s32 1, %s21
    $region7: #{rnn_sequence_forward.1} parent=1 // loop_footer_branch
      %20 = sbr.rel target = $region3
    $region8: #{rnn_sequence_forward.1} parent=1 // loop_exit
      _
    %1218 = vsyncpa [#allocation5], 1
    %s1219 = scalar_lea.sflag [#allocation5], 1
    %1220 = vsyncpa %s1219, 1
    %1221 = vsyncpa [#allocation7], 1
    %s1222 = scalar_lea.sflag [#allocation7], 1
    %1223 = vsyncpa %s1222, 1

</llo_original>
